<compile_context>
chip_gen: v7x
topology: tpu7x:2x2x1
jax: 0.10.0
libtpu: 0.0.40
codegen_flags: <defaults>
</compile_context>

<pallas_src>
import jax
import jax.numpy as jnp
from jax.experimental import pallas as pl
from jax.experimental.pallas import tpu as pltpu


GROUPS = 8            # GroupNorm groups in the ResnetBlock (PyTorch default)

# rows_w slab (width = W*hid) row indices
R_BN1S, R_BN1B, R_BN2S, R_BN2B, R_SEB2, R_FILMB = 0, 1, 2, 3, 4, 5
R_DW = 6              # rows 6..14: depthwise taps, row = R_DW + 3*ky + kx
ROWS_W = 16

# rows_o slab (width = W*oup) row indices
O_BN3S, O_BN3B, O_BB1, O_G1G, O_G1B, O_BB2, O_G2G, O_G2B = range(8)

# se_film slab (width = W*hid) row offsets
SF_SEW2 = 0           # rows [0, cr)         : SE second-FC weight (dup folded)
SF_FILMW = 8          # rows [8, 8+oup)      : time-MLP FiLM weight (W dup + concat)
SF_SEB1 = 16          # row 16, lanes [0,cr) : SE first-FC bias
SF_ROWS = 24

OPERAND_ORDER = ("pw1", "pw2", "bands", "mavg", "rows_w", "rows_o", "se_w1", "se_film")


def _make_divisible(v, divisor, min_value=None):
    if min_value is None:
        min_value = divisor
    new_v = max(min_value, int(v + divisor / 2) // divisor * divisor)
    if new_v < 0.9 * v:
        new_v += divisor
    return new_v


# ----------------------------------------------------------------------------- kernel
def make_fused_kernel(H, W, inp, hid, oup, cr, eps=1e-5):
    WI, WHID, WO = W * inp, W * hid, W * oup
    f32, bf16 = jnp.float32, jnp.bfloat16

    def hswish(v):
        return v * (jnp.clip(v + 3.0, 0.0, 6.0) * (1.0 / 6.0))

    def hsigmoid(v):
        return jnp.clip(v + 3.0, 0.0, 6.0) * (1.0 / 6.0)

    def silu(v):
        return v * jax.nn.sigmoid(v)

    def kernel(x_ref, t_ref, pw1_ref, pw2_ref, bands_ref, mavg_ref,
               rowsw_ref, rowso_ref, sew1_ref, sefw_ref, out_ref):
        b = pl.program_id(0)

        # valid-row masks for the +/-1 row shifts (pad=1 in the H direction)
        ridx = jax.lax.broadcasted_iota(jnp.int32, (H, 1), 0)
        not_top = ridx > 0
        not_bot = ridx < (H - 1)

        def shift_combine(s_top, s_mid, s_bot):
            # out[r] = s_top[r-1] + s_mid[r] + s_bot[r+1]  (zeros outside the image)
            up = jnp.where(not_top, pltpu.roll(s_top, 1, axis=0), 0.0)
            dn = jnp.where(not_bot, pltpu.roll(s_bot, H - 1, axis=0), 0.0)
            return s_mid + up + dn

        def conv3x3(src_bf, band_bf):
            # 3x3 conv (stride 1, pad 1): one wide MXU matmul against the
            # ky-concatenated band matrix, then +/-1 row shifts.
            z = jnp.dot(src_bf, band_bf, preferred_element_type=f32)       # (H, 3*WO)
            return shift_combine(z[:, :WO], z[:, WO:2 * WO], z[:, 2 * WO:])

        def dw_conv3x3(v):
            # depthwise 3x3 on the VPU: +/-hid lane rolls for kx, row rolls for ky.
            # W-edge masks are folded into the per-tap weight rows at pack time.
            v_m = pltpu.roll(v, hid, axis=1)            # value at w-1  (kx = 0 tap)
            v_p = pltpu.roll(v, WHID - hid, axis=1)     # value at w+1  (kx = 2 tap)
            s = []
            for ky in range(3):
                s.append(v_m * rowsw_ref[R_DW + 3 * ky + 0]
                         + v * rowsw_ref[R_DW + 3 * ky + 1]
                         + v_p * rowsw_ref[R_DW + 3 * ky + 2])
            return shift_combine(s[0], s[1], s[2])

        def group_norm(y, gamma, beta):
            # groups == channels: per-channel mean/var over H*W, all in f32,
            # via a single (WO, WO) averaging matrix (result stays lane-dense).
            mean_row = jnp.dot(jnp.sum(y, axis=0, keepdims=True), mavg_ref[...],
                               preferred_element_type=f32)                  # (1, WO)
            d = y - mean_row
            var_row = jnp.dot(jnp.sum(d * d, axis=0, keepdims=True), mavg_ref[...],
                              preferred_element_type=f32)
            inv_row = jax.lax.rsqrt(var_row + eps)
            return d * inv_row * gamma + beta

        x2d = x_ref[...]                                                    # (H, WI) f32

        # ---- InvertedResidual conv branch -------------------------------------------
        # 1x1 expand (block-diagonal kron weight) + folded BN + h-swish
        h = jnp.dot(x2d.astype(bf16), pw1_ref[...], preferred_element_type=f32)
        h = hswish(h * rowsw_ref[R_BN1S] + rowsw_ref[R_BN1B])               # (H, WHID)

        # depthwise 3x3 (VPU) + folded BN
        h = dw_conv3x3(h)
        h = h * rowsw_ref[R_BN2S] + rowsw_ref[R_BN2B]

        # SE: global mean (folded into FC1) -> ReLU -> FC2 (dup folded) -> h-sigmoid
        pooled = jnp.dot(jnp.sum(h, axis=0, keepdims=True), sew1_ref[...],
                         preferred_element_type=f32)                        # (1, cr)
        z = jnp.maximum(pooled + sefw_ref[SF_SEB1][0:cr], 0.0)
        gate = hsigmoid(jnp.dot(z, sefw_ref[SF_SEW2:SF_SEW2 + cr],
                                preferred_element_type=f32) + rowsw_ref[R_SEB2])
        h = hswish(h * gate)

        # 1x1 project (block-diagonal) + folded BN, identity residual
        h2 = jnp.dot(h.astype(bf16), pw2_ref[...], preferred_element_type=f32)
        out1 = x2d + (h2 * rowso_ref[O_BN3S] + rowso_ref[O_BN3B])           # (H, WO)
        out_ref[...] = out1                   # stage; reloaded for the final residual

        # ---- ResnetBlock -------------------------------------------------------------
        # time MLP -> FiLM rows (W duplication and the "+1" folded at pack time)
        tall = t_ref[...]                                                   # (B, oup)
        bsel = jax.lax.broadcasted_iota(jnp.int32, tall.shape, 0) == b
        st = silu(jnp.sum(jnp.where(bsel, tall, 0.0), axis=0, keepdims=True))  # (1, oup)
        film = jnp.dot(st, sefw_ref[SF_FILMW:SF_FILMW + oup],
                       preferred_element_type=f32) + rowsw_ref[R_FILMB]     # (1, 2*WO)
        scale_row, shift_row = film[:, :WO], film[:, WO:]

        # block1: conv3x3 + bias + GroupNorm + FiLM + SiLU
        hb = conv3x3(out1.astype(bf16), bands_ref[0]) + rowso_ref[O_BB1]
        y = group_norm(hb, rowso_ref[O_G1G], rowso_ref[O_G1B])
        y = silu(y * scale_row + shift_row)

        # block2: conv3x3 + bias + GroupNorm + SiLU
        hb = conv3x3(y.astype(bf16), bands_ref[1]) + rowso_ref[O_BB2]
        y = silu(group_norm(hb, rowso_ref[O_G2G], rowso_ref[O_G2B]))

        # residual (res_conv == Identity), single lane-dense store
        out_ref[...] = y + out_ref[...]

    return kernel


# ----------------------------------------------------------------------------- wrapper
def inverted_residual_forward(x_nhwc, t, packed):
    """x_nhwc: (B,H,W,inp) f32, t: (B,oup) f32.  stride=1, use_se=True, use_hs=True."""
    B, H, W, inp = x_nhwc.shape
    hid = packed["pw1"].shape[1] // W
    oup = packed["pw2"].shape[1] // W
    cr = packed["se_w1"].shape[1]
    assert inp == oup, "identity residual requires inp == oup (stride == 1)"
    assert H % 8 == 0 and (W * inp) % 128 == 0 and (W * oup) % 128 == 0

    kernel = make_fused_kernel(H, W, inp, hid, oup, cr)
    whole_vmem = pl.BlockSpec(memory_space=pltpu.MemorySpace.VMEM)
    operands = [packed[k] for k in OPERAND_ORDER]

    out2d = pl.pallas_call(
        kernel,
        out_shape=jax.ShapeDtypeStruct((B * H, W * oup), jnp.float32),
        grid=(B,),
        in_specs=[pl.BlockSpec((H, W * inp), lambda b: (b, 0)),   # rows of batch b
                  whole_vmem] + [whole_vmem] * len(operands),     # t + packed weights
        out_specs=pl.BlockSpec((H, W * oup), lambda b: (b, 0)),
        compiler_params=pltpu.CompilerParams(
            dimension_semantics=("parallel",)),                   # 2 TCs on v7x
    )(x_nhwc.reshape(B * H, W * inp), t, *operands)
    return out2d.reshape(B, H, W, oup)


# ----------------------------------------------------------------------------- packing
def pack_params(p, H, W, inp, hid, oup):
    """Fold BN stats, build lane-dense rows / block-diagonal 1x1 weights /
    N-concatenated banded 3x3 weights, and coalesce everything into 8 slabs."""
    f32, bf16 = jnp.float32, jnp.bfloat16
    WHID, WO = W * hid, W * oup
    assert oup == GROUPS, "GroupNorm path specialized to groups == channels (oup == 8)"
    assert hid == 2 * oup, "packed slab widths assume hidden_dim == 2 * oup"
    inv_hw = 1.0 / float(H * W)
    eyeW = jnp.eye(W, dtype=f32)

    def tile_row(v, c):                 # per-channel vector -> (W*c,) lane-dense row
        return jnp.tile(jnp.asarray(v, f32).reshape(-1), (W,))

    def expand_mat(c):                  # (c, W*c): duplicate each channel across W slots
        return jnp.tile(jnp.eye(c, dtype=f32), (1, W))

    def reduce_mat(c):                  # (W*c, c): fold W packing, 1/(H*W) folded in
        return jnp.tile(jnp.eye(c, dtype=f32), (W, 1)) * inv_hw

    def band_cat(w4):                   # (3,3,Cin,Cout) -> (W*Cin, 3*W*Cout), ky concat
        mats = []
        for ky in range(3):
            m = jnp.zeros((W * w4.shape[2], W * w4.shape[3]), f32)
            for kx in range(3):
                m = m + jnp.kron(jnp.eye(W, k=-(kx - 1), dtype=f32), w4[ky, kx])
            mats.append(m)
        return jnp.concatenate(mats, axis=1)

    # depthwise tap rows (kx W-edge masks folded in)
    lane_w = jnp.repeat(jnp.arange(W), hid)
    dw_rows = []
    for ky in range(3):
        for kx in range(3):
            row = tile_row(p["w_dw"][ky, kx], hid)
            if kx == 0:
                row = jnp.where(lane_w == 0, 0.0, row)
            if kx == 2:
                row = jnp.where(lane_w == W - 1, 0.0, row)
            dw_rows.append(row)

    E_hid, E_oup = expand_mat(hid), expand_mat(oup)
    seb2f = tile_row(p["se_b2"], hid)                          # SE FC2 bias, duplicated
    bfilm = jnp.concatenate([tile_row(p["bt"][0, :oup], oup) + 1.0,   # FiLM "+1" folded
                             tile_row(p["bt"][0, oup:], oup)])        # (2*W*oup,)

    rows_w = jnp.stack(
        [tile_row(p["bn1_scale"], hid), tile_row(p["bn1_shift"], hid),
         tile_row(p["bn2_scale"], hid), tile_row(p["bn2_shift"], hid),
         seb2f, bfilm] + dw_rows + [jnp.zeros((WHID,), f32)], axis=0)
    assert rows_w.shape == (ROWS_W, WHID)

    rows_o = jnp.stack(
        [tile_row(p["bn3_scale"], oup), tile_row(p["bn3_shift"], oup),
         tile_row(p["bb1"], oup), tile_row(p["gn1_gamma"], oup), tile_row(p["gn1_beta"], oup),
         tile_row(p["bb2"], oup), tile_row(p["gn2_gamma"], oup), tile_row(p["gn2_beta"], oup)],
        axis=0)                                                          # (8, WO)

    cr = p["se_w1"].shape[1]
    wfilm = jnp.concatenate([jnp.dot(p["wt"][:, :oup], E_oup),
                             jnp.dot(p["wt"][:, oup:], E_oup)], axis=1)  # (oup, 2*W*oup)
    se_film = jnp.zeros((SF_ROWS, WHID), f32)
    se_film = se_film.at[SF_SEW2:SF_SEW2 + cr, :].set(jnp.dot(p["se_w2"], E_hid))
    se_film = se_film.at[SF_FILMW:SF_FILMW + oup, :].set(wfilm)
    se_film = se_film.at[SF_SEB1, 0:cr].set(p["se_b1"].reshape(-1))

    q = {
        "pw1":  jnp.kron(eyeW, p["w_pw1"]).astype(bf16),                  # (W*inp, W*hid)
        "pw2":  jnp.kron(eyeW, p["w_pw2"]).astype(bf16),                  # (W*hid, W*oup)
        "bands": jnp.stack([band_cat(p["wb1"]),
                            band_cat(p["wb2"])]).astype(bf16),            # (2, WO, 3*WO)
        "mavg": jnp.dot(reduce_mat(oup), E_oup),                          # (WO, WO) f32
        "rows_w": rows_w,                                                  # (16, WHID) f32
        "rows_o": rows_o,                                                  # (8, WO) f32
        "se_w1": jnp.dot(reduce_mat(hid), p["se_w1"]),                     # (WHID, cr) f32
        "se_film": se_film,                                                # (24, WHID) f32
    }
    return q


def _bn_fold(key, c, eps=1e-5):
    k1, k2, k3, k4 = jax.random.split(key, 4)
    gamma = 1.0 + 0.05 * jax.random.normal(k1, (c,), jnp.float32)
    beta = 0.05 * jax.random.normal(k2, (c,), jnp.float32)
    mean = 0.05 * jax.random.normal(k3, (c,), jnp.float32)
    var = 1.0 + 0.05 * jnp.abs(jax.random.normal(k4, (c,), jnp.float32))
    scale = gamma / jnp.sqrt(var + eps)
    shift = beta - mean * scale
    return scale, shift


def init_params(key, inp, hid, oup, kernel_size=3, reduction=4):
    keys = iter(jax.random.split(key, 32))

    def nrm(shape, s=0.1):
        return s * jax.random.normal(next(keys), shape, jnp.float32)

    cr = _make_divisible(hid // reduction, 8)
    p = {}
    p["w_pw1"] = nrm((inp, hid))
    p["bn1_scale"], p["bn1_shift"] = _bn_fold(next(keys), hid)
    p["w_dw"] = nrm((kernel_size, kernel_size, hid))
    p["bn2_scale"], p["bn2_shift"] = _bn_fold(next(keys), hid)
    p["se_w1"], p["se_b1"] = nrm((hid, cr)), nrm((1, cr))
    p["se_w2"], p["se_b2"] = nrm((cr, hid)), nrm((1, hid))
    p["w_pw2"] = nrm((hid, oup))
    p["bn3_scale"], p["bn3_shift"] = _bn_fold(next(keys), oup)
    p["wt"], p["bt"] = nrm((oup, 2 * oup)), nrm((1, 2 * oup))
    p["wb1"], p["bb1"] = nrm((3, 3, oup, oup)), nrm((oup,))
    p["gn1_gamma"], p["gn1_beta"] = 1.0 + nrm((oup,), 0.05), nrm((oup,), 0.05)
    p["wb2"], p["bb2"] = nrm((3, 3, oup, oup)), nrm((oup,))
    p["gn2_gamma"], p["gn2_beta"] = 1.0 + nrm((oup,), 0.05), nrm((oup,), 0.05)
    return p


# ----------------------------------------------------------------------------- main
if __name__ == "__main__":
    B, H, W = 2, 16, 16
    INP, HID, OUP = 8, 16, 8          # inp, hidden_dim, oup  (kernel_size=3, stride=1)

    key = jax.random.PRNGKey(0)
    kx_, kt_ = jax.random.split(key)
    x_nchw = jax.random.normal(kx_, (B, INP, H, W), jnp.float32)   # PyTorch NCHW input
    t = jax.random.normal(kt_, (B, OUP), jnp.float32)              # time embedding (b, oup)

    raw = init_params(jax.random.PRNGKey(1), INP, HID, OUP)
    packed = pack_params(raw, H, W, INP, HID, OUP)

    x_nhwc = jnp.transpose(x_nchw, (0, 2, 3, 1))                   # NCHW -> NHWC
    fwd = jax.jit(inverted_residual_forward)
    out_nhwc = fwd(x_nhwc, t, packed)
    out_nchw = jnp.transpose(out_nhwc, (0, 3, 1, 2))               # back to NCHW

    jax.block_until_ready(out_nchw)
    assert out_nchw.shape == (B, OUP, H, W)
    # TODO(synk): for repeated per-layer use, keep the ~0.4 MiB packed weights resident /
    # prefetched across calls instead of re-DMAing them every invocation.
    print("KERNEL_OK")
</pallas_src>

<mosaic_0001>
module attributes {stable_mosaic.version = 11 : i64} {
  func.func @kernel(%arg0: i32, %arg1: memref<16x128xf32, #tpu.memory_space<vmem>>, %arg2: memref<2x8xf32, #tpu.memory_space<vmem>>, %arg3: memref<128x256xbf16, #tpu.memory_space<vmem>>, %arg4: memref<256x128xbf16, #tpu.memory_space<vmem>>, %arg5: memref<2x128x384xbf16, #tpu.memory_space<vmem>>, %arg6: memref<128x128xf32, #tpu.memory_space<vmem>>, %arg7: memref<16x256xf32, #tpu.memory_space<vmem>>, %arg8: memref<8x128xf32, #tpu.memory_space<vmem>>, %arg9: memref<256x8xf32, #tpu.memory_space<vmem>>, %arg10: memref<24x256xf32, #tpu.memory_space<vmem>>, %arg11: memref<16x128xf32, #tpu.memory_space<vmem>>) attributes {dimension_semantics = [#tpu.dimension_semantics<parallel>], iteration_bounds = array<i64: 2>, scalar_prefetch = 0 : i64, scratch_operands = 0 : i64, tpu.core_type = #tpu.core_type<tc>, window_params = [{transform_indices = @transform_0, window_bounds = array<i64: 16, 128>}, {pipeline_mode = #tpu.pipeline_mode<synchronous>, transform_indices = @transform_1, window_bounds = array<i64: 2, 8>}, {pipeline_mode = #tpu.pipeline_mode<synchronous>, transform_indices = @transform_2, window_bounds = array<i64: 128, 256>}, {pipeline_mode = #tpu.pipeline_mode<synchronous>, transform_indices = @transform_3, window_bounds = array<i64: 256, 128>}, {pipeline_mode = #tpu.pipeline_mode<synchronous>, transform_indices = @transform_4, window_bounds = array<i64: 2, 128, 384>}, {pipeline_mode = #tpu.pipeline_mode<synchronous>, transform_indices = @transform_5, window_bounds = array<i64: 128, 128>}, {pipeline_mode = #tpu.pipeline_mode<synchronous>, transform_indices = @transform_6, window_bounds = array<i64: 16, 256>}, {pipeline_mode = #tpu.pipeline_mode<synchronous>, transform_indices = @transform_7, window_bounds = array<i64: 8, 128>}, {pipeline_mode = #tpu.pipeline_mode<synchronous>, transform_indices = @transform_8, window_bounds = array<i64: 256, 8>}, {pipeline_mode = #tpu.pipeline_mode<synchronous>, transform_indices = @transform_9, window_bounds = array<i64: 24, 256>}, {transform_indices = @transform_10, window_bounds = array<i64: 16, 128>}]} {
    %0 = tpu.iota {dimensions = array<i32: 0>} : vector<16x1xi32>
    %c0_i32 = arith.constant 0 : i32
    %1 = vector.broadcast %c0_i32 : i32 to vector<16x1xi32>
    %2 = arith.cmpi sgt, %0, %1 : vector<16x1xi32>
    %c15_i32 = arith.constant 15 : i32
    %3 = vector.broadcast %c15_i32 : i32 to vector<16x1xi32>
    %4 = arith.cmpi slt, %0, %3 : vector<16x1xi32>
    %c0 = arith.constant 0 : index
    %c0_0 = arith.constant 0 : index
    %5 = vector.load %arg1[%c0, %c0_0] : memref<16x128xf32, #tpu.memory_space<vmem>>, vector<16x128xf32>
    %6 = arith.truncf %5 : vector<16x128xf32> to vector<16x128xbf16>
    %c0_1 = arith.constant 0 : index
    %c0_2 = arith.constant 0 : index
    %7 = vector.load %arg3[%c0_1, %c0_2] : memref<128x256xbf16, #tpu.memory_space<vmem>>, vector<128x256xbf16>
    %cst = arith.constant dense<0.000000e+00> : vector<16x256xf32>
    %8 = tpu.matmul %6, %7, %cst {dimension_numbers = #tpu.dot_dimension_numbers<[1], [0], [0], [1], [0, 0, 1, 1], [], []>} : vector<16x128xbf16>, vector<128x256xbf16>, vector<16x256xf32> -> vector<16x256xf32>
    %c0_3 = arith.constant 0 : index
    %c0_4 = arith.constant 0 : index
    %9 = vector.load %arg7[%c0_3, %c0_4] : memref<16x256xf32, #tpu.memory_space<vmem>>, vector<1x256xf32>
    %10 = vector.shape_cast %9 : vector<1x256xf32> to vector<256xf32>
    %11 = vector.shape_cast %10 : vector<256xf32> to vector<1x256xf32>
    %12 = vector.broadcast %11 : vector<1x256xf32> to vector<16x256xf32>
    %13 = arith.mulf %8, %12 : vector<16x256xf32>
    %c1 = arith.constant 1 : index
    %c0_5 = arith.constant 0 : index
    %14 = vector.load %arg7[%c1, %c0_5] : memref<16x256xf32, #tpu.memory_space<vmem>>, vector<1x256xf32>
    %15 = vector.shape_cast %14 : vector<1x256xf32> to vector<256xf32>
    %16 = vector.shape_cast %15 : vector<256xf32> to vector<1x256xf32>
    %17 = vector.broadcast %16 : vector<1x256xf32> to vector<16x256xf32>
    %18 = arith.addf %13, %17 : vector<16x256xf32>
    %cst_6 = arith.constant 3.000000e+00 : f32
    %19 = vector.broadcast %cst_6 : f32 to vector<16x256xf32>
    %20 = arith.addf %18, %19 : vector<16x256xf32>
    %cst_7 = arith.constant 0.000000e+00 : f32
    %cst_8 = arith.constant 6.000000e+00 : f32
    %21 = vector.broadcast %cst_7 : f32 to vector<16x256xf32>
    %22 = arith.maximumf %21, %20 : vector<16x256xf32>
    %23 = vector.broadcast %cst_8 : f32 to vector<16x256xf32>
    %24 = arith.minimumf %23, %22 : vector<16x256xf32>
    %cst_9 = arith.constant 0.166666672 : f32
    %25 = vector.broadcast %cst_9 : f32 to vector<16x256xf32>
    %26 = arith.mulf %24, %25 : vector<16x256xf32>
    %27 = arith.mulf %18, %26 : vector<16x256xf32>
    %c16_i32 = arith.constant 16 : i32
    %28 = tpu.dynamic_rotate %27 by %c16_i32 dim 1 : vector<16x256xf32>, i32 -> vector<16x256xf32>
    %c240_i32 = arith.constant 240 : i32
    %29 = tpu.dynamic_rotate %27 by %c240_i32 dim 1 : vector<16x256xf32>, i32 -> vector<16x256xf32>
    %c6 = arith.constant 6 : index
    %c0_10 = arith.constant 0 : index
    %30 = vector.load %arg7[%c6, %c0_10] : memref<16x256xf32, #tpu.memory_space<vmem>>, vector<1x256xf32>
    %31 = vector.shape_cast %30 : vector<1x256xf32> to vector<256xf32>
    %32 = vector.shape_cast %31 : vector<256xf32> to vector<1x256xf32>
    %33 = vector.broadcast %32 : vector<1x256xf32> to vector<16x256xf32>
    %34 = arith.mulf %28, %33 : vector<16x256xf32>
    %c7 = arith.constant 7 : index
    %c0_11 = arith.constant 0 : index
    %35 = vector.load %arg7[%c7, %c0_11] : memref<16x256xf32, #tpu.memory_space<vmem>>, vector<1x256xf32>
    %36 = vector.shape_cast %35 : vector<1x256xf32> to vector<256xf32>
    %37 = vector.shape_cast %36 : vector<256xf32> to vector<1x256xf32>
    %38 = vector.broadcast %37 : vector<1x256xf32> to vector<16x256xf32>
    %39 = arith.mulf %27, %38 : vector<16x256xf32>
    %40 = arith.addf %34, %39 : vector<16x256xf32>
    %c8 = arith.constant 8 : index
    %c0_12 = arith.constant 0 : index
    %41 = vector.load %arg7[%c8, %c0_12] : memref<16x256xf32, #tpu.memory_space<vmem>>, vector<1x256xf32>
    %42 = vector.shape_cast %41 : vector<1x256xf32> to vector<256xf32>
    %43 = vector.shape_cast %42 : vector<256xf32> to vector<1x256xf32>
    %44 = vector.broadcast %43 : vector<1x256xf32> to vector<16x256xf32>
    %45 = arith.mulf %29, %44 : vector<16x256xf32>
    %46 = arith.addf %40, %45 : vector<16x256xf32>
    %c9 = arith.constant 9 : index
    %c0_13 = arith.constant 0 : index
    %47 = vector.load %arg7[%c9, %c0_13] : memref<16x256xf32, #tpu.memory_space<vmem>>, vector<1x256xf32>
    %48 = vector.shape_cast %47 : vector<1x256xf32> to vector<256xf32>
    %49 = vector.shape_cast %48 : vector<256xf32> to vector<1x256xf32>
    %50 = vector.broadcast %49 : vector<1x256xf32> to vector<16x256xf32>
    %51 = arith.mulf %28, %50 : vector<16x256xf32>
    %c10 = arith.constant 10 : index
    %c0_14 = arith.constant 0 : index
    %52 = vector.load %arg7[%c10, %c0_14] : memref<16x256xf32, #tpu.memory_space<vmem>>, vector<1x256xf32>
    %53 = vector.shape_cast %52 : vector<1x256xf32> to vector<256xf32>
    %54 = vector.shape_cast %53 : vector<256xf32> to vector<1x256xf32>
    %55 = vector.broadcast %54 : vector<1x256xf32> to vector<16x256xf32>
    %56 = arith.mulf %27, %55 : vector<16x256xf32>
    %57 = arith.addf %51, %56 : vector<16x256xf32>
    %c11 = arith.constant 11 : index
    %c0_15 = arith.constant 0 : index
    %58 = vector.load %arg7[%c11, %c0_15] : memref<16x256xf32, #tpu.memory_space<vmem>>, vector<1x256xf32>
    %59 = vector.shape_cast %58 : vector<1x256xf32> to vector<256xf32>
    %60 = vector.shape_cast %59 : vector<256xf32> to vector<1x256xf32>
    %61 = vector.broadcast %60 : vector<1x256xf32> to vector<16x256xf32>
    %62 = arith.mulf %29, %61 : vector<16x256xf32>
    %63 = arith.addf %57, %62 : vector<16x256xf32>
    %c12 = arith.constant 12 : index
    %c0_16 = arith.constant 0 : index
    %64 = vector.load %arg7[%c12, %c0_16] : memref<16x256xf32, #tpu.memory_space<vmem>>, vector<1x256xf32>
    %65 = vector.shape_cast %64 : vector<1x256xf32> to vector<256xf32>
    %66 = vector.shape_cast %65 : vector<256xf32> to vector<1x256xf32>
    %67 = vector.broadcast %66 : vector<1x256xf32> to vector<16x256xf32>
    %68 = arith.mulf %28, %67 : vector<16x256xf32>
    %c13 = arith.constant 13 : index
    %c0_17 = arith.constant 0 : index
    %69 = vector.load %arg7[%c13, %c0_17] : memref<16x256xf32, #tpu.memory_space<vmem>>, vector<1x256xf32>
    %70 = vector.shape_cast %69 : vector<1x256xf32> to vector<256xf32>
    %71 = vector.shape_cast %70 : vector<256xf32> to vector<1x256xf32>
    %72 = vector.broadcast %71 : vector<1x256xf32> to vector<16x256xf32>
    %73 = arith.mulf %27, %72 : vector<16x256xf32>
    %74 = arith.addf %68, %73 : vector<16x256xf32>
    %c14 = arith.constant 14 : index
    %c0_18 = arith.constant 0 : index
    %75 = vector.load %arg7[%c14, %c0_18] : memref<16x256xf32, #tpu.memory_space<vmem>>, vector<1x256xf32>
    %76 = vector.shape_cast %75 : vector<1x256xf32> to vector<256xf32>
    %77 = vector.shape_cast %76 : vector<256xf32> to vector<1x256xf32>
    %78 = vector.broadcast %77 : vector<1x256xf32> to vector<16x256xf32>
    %79 = arith.mulf %29, %78 : vector<16x256xf32>
    %80 = arith.addf %74, %79 : vector<16x256xf32>
    %c1_i32 = arith.constant 1 : i32
    %81 = tpu.dynamic_rotate %46 by %c1_i32 dim 0 : vector<16x256xf32>, i32 -> vector<16x256xf32>
    %cst_19 = arith.constant 0.000000e+00 : f32
    %82 = vector.shape_cast %2 : vector<16x1xi1> to vector<16x1xi1>
    %83 = vector.broadcast %82 : vector<16x1xi1> to vector<16x256xi1>
    %84 = vector.broadcast %cst_19 : f32 to vector<16x256xf32>
    %85 = arith.select %83, %81, %84 : vector<16x256xi1>, vector<16x256xf32>
    %c15_i32_20 = arith.constant 15 : i32
    %86 = tpu.dynamic_rotate %80 by %c15_i32_20 dim 0 : vector<16x256xf32>, i32 -> vector<16x256xf32>
    %cst_21 = arith.constant 0.000000e+00 : f32
    %87 = vector.shape_cast %4 : vector<16x1xi1> to vector<16x1xi1>
    %88 = vector.broadcast %87 : vector<16x1xi1> to vector<16x256xi1>
    %89 = vector.broadcast %cst_21 : f32 to vector<16x256xf32>
    %90 = arith.select %88, %86, %89 : vector<16x256xi1>, vector<16x256xf32>
    %91 = arith.addf %63, %85 : vector<16x256xf32>
    %92 = arith.addf %91, %90 : vector<16x256xf32>
    %c2 = arith.constant 2 : index
    %c0_22 = arith.constant 0 : index
    %93 = vector.load %arg7[%c2, %c0_22] : memref<16x256xf32, #tpu.memory_space<vmem>>, vector<1x256xf32>
    %94 = vector.shape_cast %93 : vector<1x256xf32> to vector<256xf32>
    %95 = vector.shape_cast %94 : vector<256xf32> to vector<1x256xf32>
    %96 = vector.broadcast %95 : vector<1x256xf32> to vector<16x256xf32>
    %97 = arith.mulf %92, %96 : vector<16x256xf32>
    %c3 = arith.constant 3 : index
    %c0_23 = arith.constant 0 : index
    %98 = vector.load %arg7[%c3, %c0_23] : memref<16x256xf32, #tpu.memory_space<vmem>>, vector<1x256xf32>
    %99 = vector.shape_cast %98 : vector<1x256xf32> to vector<256xf32>
    %100 = vector.shape_cast %99 : vector<256xf32> to vector<1x256xf32>
    %101 = vector.broadcast %100 : vector<1x256xf32> to vector<16x256xf32>
    %102 = arith.addf %97, %101 : vector<16x256xf32>
    %cst_24 = arith.constant dense<0.000000e+00> : vector<256xf32>
    %103 = vector.multi_reduction <add>, %102, %cst_24 [0] : vector<16x256xf32> to vector<256xf32>
    %104 = vector.shape_cast %103 : vector<256xf32> to vector<1x256xf32>
    %c0_25 = arith.constant 0 : index
    %c0_26 = arith.constant 0 : index
    %105 = vector.load %arg9[%c0_25, %c0_26] : memref<256x8xf32, #tpu.memory_space<vmem>>, vector<256x8xf32>
    %cst_27 = arith.constant dense<0.000000e+00> : vector<1x8xf32>
    %106 = tpu.matmul %104, %105, %cst_27 {dimension_numbers = #tpu.dot_dimension_numbers<[1], [0], [0], [1], [0, 0, 1, 1], [], []>} : vector<1x256xf32>, vector<256x8xf32>, vector<1x8xf32> -> vector<1x8xf32>
    %c16 = arith.constant 16 : index
    %c0_28 = arith.constant 0 : index
    %107 = vector.load %arg10[%c16, %c0_28] : memref<24x256xf32, #tpu.memory_space<vmem>>, vector<1x256xf32>
    %108 = vector.shape_cast %107 : vector<1x256xf32> to vector<256xf32>
    %109 = vector.extract_strided_slice %108 {offsets = [0], sizes = [8], strides = [1]} : vector<256xf32> to vector<8xf32>
    %110 = vector.shape_cast %109 : vector<8xf32> to vector<1x8xf32>
    %111 = arith.addf %106, %110 : vector<1x8xf32>
    %cst_29 = arith.constant 0.000000e+00 : f32
    %112 = vector.broadcast %cst_29 : f32 to vector<1x8xf32>
    %113 = arith.maximumf %111, %112 : vector<1x8xf32>
    %c0_30 = arith.constant 0 : index
    %c0_31 = arith.constant 0 : index
    %114 = vector.load %arg10[%c0_30, %c0_31] : memref<24x256xf32, #tpu.memory_space<vmem>>, vector<8x256xf32>
    %cst_32 = arith.constant dense<0.000000e+00> : vector<1x256xf32>
    %115 = tpu.matmul %113, %114, %cst_32 {dimension_numbers = #tpu.dot_dimension_numbers<[1], [0], [0], [1], [0, 0, 1, 1], [], []>} : vector<1x8xf32>, vector<8x256xf32>, vector<1x256xf32> -> vector<1x256xf32>
    %c4 = arith.constant 4 : index
    %c0_33 = arith.constant 0 : index
    %116 = vector.load %arg7[%c4, %c0_33] : memref<16x256xf32, #tpu.memory_space<vmem>>, vector<1x256xf32>
    %117 = vector.shape_cast %116 : vector<1x256xf32> to vector<256xf32>
    %118 = vector.shape_cast %117 : vector<256xf32> to vector<1x256xf32>
    %119 = arith.addf %115, %118 : vector<1x256xf32>
    %cst_34 = arith.constant 3.000000e+00 : f32
    %120 = vector.broadcast %cst_34 : f32 to vector<1x256xf32>
    %121 = arith.addf %119, %120 : vector<1x256xf32>
    %cst_35 = arith.constant 0.000000e+00 : f32
    %cst_36 = arith.constant 6.000000e+00 : f32
    %122 = vector.broadcast %cst_35 : f32 to vector<1x256xf32>
    %123 = arith.maximumf %122, %121 : vector<1x256xf32>
    %124 = vector.broadcast %cst_36 : f32 to vector<1x256xf32>
    %125 = arith.minimumf %124, %123 : vector<1x256xf32>
    %cst_37 = arith.constant 0.166666672 : f32
    %126 = vector.broadcast %cst_37 : f32 to vector<1x256xf32>
    %127 = arith.mulf %125, %126 : vector<1x256xf32>
    %128 = vector.broadcast %127 : vector<1x256xf32> to vector<16x256xf32>
    %129 = arith.mulf %102, %128 : vector<16x256xf32>
    %cst_38 = arith.constant 3.000000e+00 : f32
    %130 = vector.broadcast %cst_38 : f32 to vector<16x256xf32>
    %131 = arith.addf %129, %130 : vector<16x256xf32>
    %cst_39 = arith.constant 0.000000e+00 : f32
    %cst_40 = arith.constant 6.000000e+00 : f32
    %132 = vector.broadcast %cst_39 : f32 to vector<16x256xf32>
    %133 = arith.maximumf %132, %131 : vector<16x256xf32>
    %134 = vector.broadcast %cst_40 : f32 to vector<16x256xf32>
    %135 = arith.minimumf %134, %133 : vector<16x256xf32>
    %cst_41 = arith.constant 0.166666672 : f32
    %136 = vector.broadcast %cst_41 : f32 to vector<16x256xf32>
    %137 = arith.mulf %135, %136 : vector<16x256xf32>
    %138 = arith.mulf %129, %137 : vector<16x256xf32>
    %139 = arith.truncf %138 : vector<16x256xf32> to vector<16x256xbf16>
    %c0_42 = arith.constant 0 : index
    %c0_43 = arith.constant 0 : index
    %140 = vector.load %arg4[%c0_42, %c0_43] : memref<256x128xbf16, #tpu.memory_space<vmem>>, vector<256x128xbf16>
    %cst_44 = arith.constant dense<0.000000e+00> : vector<16x128xf32>
    %141 = tpu.matmul %139, %140, %cst_44 {dimension_numbers = #tpu.dot_dimension_numbers<[1], [0], [0], [1], [0, 0, 1, 1], [], []>} : vector<16x256xbf16>, vector<256x128xbf16>, vector<16x128xf32> -> vector<16x128xf32>
    %c0_45 = arith.constant 0 : index
    %c0_46 = arith.constant 0 : index
    %142 = vector.load %arg8[%c0_45, %c0_46] : memref<8x128xf32, #tpu.memory_space<vmem>>, vector<1x128xf32>
    %143 = vector.shape_cast %142 : vector<1x128xf32> to vector<128xf32>
    %144 = vector.shape_cast %143 : vector<128xf32> to vector<1x128xf32>
    %145 = vector.broadcast %144 : vector<1x128xf32> to vector<16x128xf32>
    %146 = arith.mulf %141, %145 : vector<16x128xf32>
    %c1_47 = arith.constant 1 : index
    %c0_48 = arith.constant 0 : index
    %147 = vector.load %arg8[%c1_47, %c0_48] : memref<8x128xf32, #tpu.memory_space<vmem>>, vector<1x128xf32>
    %148 = vector.shape_cast %147 : vector<1x128xf32> to vector<128xf32>
    %149 = vector.shape_cast %148 : vector<128xf32> to vector<1x128xf32>
    %150 = vector.broadcast %149 : vector<1x128xf32> to vector<16x128xf32>
    %151 = arith.addf %146, %150 : vector<16x128xf32>
    %152 = arith.addf %5, %151 : vector<16x128xf32>
    %c0_49 = arith.constant 0 : index
    %c0_50 = arith.constant 0 : index
    %153 = vector.load %arg11[%c0_49, %c0_50] : memref<16x128xf32, #tpu.memory_space<vmem>>, vector<16x128xf32>
    tpu.vector_store %arg11[%c0_49, %c0_50], %152 {strides = array<i32>} : memref<16x128xf32, #tpu.memory_space<vmem>>, vector<16x128xf32>,
    %c0_51 = arith.constant 0 : index
    %c0_52 = arith.constant 0 : index
    %154 = vector.load %arg2[%c0_51, %c0_52] : memref<2x8xf32, #tpu.memory_space<vmem>>, vector<2x8xf32>
    %155 = tpu.iota {dimensions = array<i32: 0>} : vector<2x8xi32>
    %156 = vector.broadcast %arg0 : i32 to vector<2x8xi32>
    %157 = arith.cmpi eq, %155, %156 : vector<2x8xi32>
    %cst_53 = arith.constant 0.000000e+00 : f32
    %158 = vector.broadcast %cst_53 : f32 to vector<2x8xf32>
    %159 = arith.select %157, %154, %158 : vector<2x8xi1>, vector<2x8xf32>
    %cst_54 = arith.constant dense<0.000000e+00> : vector<8xf32>
    %160 = vector.multi_reduction <add>, %159, %cst_54 [0] : vector<2x8xf32> to vector<8xf32>
    %161 = vector.shape_cast %160 : vector<8xf32> to vector<1x8xf32>
    %162 = arith.negf %161 : vector<1x8xf32>
    %163 = math.exp %162 : vector<1x8xf32>
    %cst_55 = arith.constant 1.000000e+00 : f32
    %164 = vector.broadcast %cst_55 : f32 to vector<1x8xf32>
    %165 = arith.addf %164, %163 : vector<1x8xf32>
    %166 = arith.divf %164, %165 : vector<1x8xf32>
    %167 = arith.mulf %161, %166 : vector<1x8xf32>
    %c8_56 = arith.constant 8 : index
    %c0_57 = arith.constant 0 : index
    %168 = vector.load %arg10[%c8_56, %c0_57] : memref<24x256xf32, #tpu.memory_space<vmem>>, vector<8x256xf32>
    %cst_58 = arith.constant dense<0.000000e+00> : vector<1x256xf32>
    %169 = tpu.matmul %167, %168, %cst_58 {dimension_numbers = #tpu.dot_dimension_numbers<[1], [0], [0], [1], [0, 0, 1, 1], [], []>} : vector<1x8xf32>, vector<8x256xf32>, vector<1x256xf32> -> vector<1x256xf32>
    %c5 = arith.constant 5 : index
    %c0_59 = arith.constant 0 : index
    %170 = vector.load %arg7[%c5, %c0_59] : memref<16x256xf32, #tpu.memory_space<vmem>>, vector<1x256xf32>
    %171 = vector.shape_cast %170 : vector<1x256xf32> to vector<256xf32>
    %172 = vector.shape_cast %171 : vector<256xf32> to vector<1x256xf32>
    %173 = arith.addf %169, %172 : vector<1x256xf32>
    %174 = vector.extract_strided_slice %173 {offsets = [0, 0], sizes = [1, 128], strides = [1, 1]} : vector<1x256xf32> to vector<1x128xf32>
    %175 = vector.extract_strided_slice %173 {offsets = [0, 128], sizes = [1, 128], strides = [1, 1]} : vector<1x256xf32> to vector<1x128xf32>
    %176 = arith.truncf %152 : vector<16x128xf32> to vector<16x128xbf16>
    %c0_60 = arith.constant 0 : index
    %c0_61 = arith.constant 0 : index
    %c0_62 = arith.constant 0 : index
    %177 = vector.load %arg5[%c0_60, %c0_61, %c0_62] : memref<2x128x384xbf16, #tpu.memory_space<vmem>>, vector<1x128x384xbf16>
    %178 = vector.shape_cast %177 : vector<1x128x384xbf16> to vector<128x384xbf16>
    %cst_63 = arith.constant dense<0.000000e+00> : vector<16x384xf32>
    %179 = tpu.matmul %176, %178, %cst_63 {dimension_numbers = #tpu.dot_dimension_numbers<[1], [0], [0], [1], [0, 0, 1, 1], [], []>} : vector<16x128xbf16>, vector<128x384xbf16>, vector<16x384xf32> -> vector<16x384xf32>
    %180 = vector.extract_strided_slice %179 {offsets = [0, 0], sizes = [16, 128], strides = [1, 1]} : vector<16x384xf32> to vector<16x128xf32>
    %181 = vector.extract_strided_slice %179 {offsets = [0, 128], sizes = [16, 128], strides = [1, 1]} : vector<16x384xf32> to vector<16x128xf32>
    %182 = vector.extract_strided_slice %179 {offsets = [0, 256], sizes = [16, 128], strides = [1, 1]} : vector<16x384xf32> to vector<16x128xf32>
    %c1_i32_64 = arith.constant 1 : i32
    %183 = tpu.dynamic_rotate %180 by %c1_i32_64 dim 0 : vector<16x128xf32>, i32 -> vector<16x128xf32>
    %cst_65 = arith.constant 0.000000e+00 : f32
    %184 = vector.shape_cast %2 : vector<16x1xi1> to vector<16x1xi1>
    %185 = vector.broadcast %184 : vector<16x1xi1> to vector<16x128xi1>
    %186 = vector.broadcast %cst_65 : f32 to vector<16x128xf32>
    %187 = arith.select %185, %183, %186 : vector<16x128xi1>, vector<16x128xf32>
    %c15_i32_66 = arith.constant 15 : i32
    %188 = tpu.dynamic_rotate %182 by %c15_i32_66 dim 0 : vector<16x128xf32>, i32 -> vector<16x128xf32>
    %cst_67 = arith.constant 0.000000e+00 : f32
    %189 = vector.shape_cast %4 : vector<16x1xi1> to vector<16x1xi1>
    %190 = vector.broadcast %189 : vector<16x1xi1> to vector<16x128xi1>
    %191 = vector.broadcast %cst_67 : f32 to vector<16x128xf32>
    %192 = arith.select %190, %188, %191 : vector<16x128xi1>, vector<16x128xf32>
    %193 = arith.addf %181, %187 : vector<16x128xf32>
    %194 = arith.addf %193, %192 : vector<16x128xf32>
    %c2_68 = arith.constant 2 : index
    %c0_69 = arith.constant 0 : index
    %195 = vector.load %arg8[%c2_68, %c0_69] : memref<8x128xf32, #tpu.memory_space<vmem>>, vector<1x128xf32>
    %196 = vector.shape_cast %195 : vector<1x128xf32> to vector<128xf32>
    %197 = vector.shape_cast %196 : vector<128xf32> to vector<1x128xf32>
    %198 = vector.broadcast %197 : vector<1x128xf32> to vector<16x128xf32>
    %199 = arith.addf %194, %198 : vector<16x128xf32>
    %c3_70 = arith.constant 3 : index
    %c0_71 = arith.constant 0 : index
    %200 = vector.load %arg8[%c3_70, %c0_71] : memref<8x128xf32, #tpu.memory_space<vmem>>, vector<1x128xf32>
    %201 = vector.shape_cast %200 : vector<1x128xf32> to vector<128xf32>
    %c4_72 = arith.constant 4 : index
    %c0_73 = arith.constant 0 : index
    %202 = vector.load %arg8[%c4_72, %c0_73] : memref<8x128xf32, #tpu.memory_space<vmem>>, vector<1x128xf32>
    %203 = vector.shape_cast %202 : vector<1x128xf32> to vector<128xf32>
    %cst_74 = arith.constant dense<0.000000e+00> : vector<128xf32>
    %204 = vector.multi_reduction <add>, %199, %cst_74 [0] : vector<16x128xf32> to vector<128xf32>
    %205 = vector.shape_cast %204 : vector<128xf32> to vector<1x128xf32>
    %c0_75 = arith.constant 0 : index
    %c0_76 = arith.constant 0 : index
    %206 = vector.load %arg6[%c0_75, %c0_76] : memref<128x128xf32, #tpu.memory_space<vmem>>, vector<128x128xf32>
    %cst_77 = arith.constant dense<0.000000e+00> : vector<1x128xf32>
    %207 = tpu.matmul %205, %206, %cst_77 {dimension_numbers = #tpu.dot_dimension_numbers<[1], [0], [0], [1], [0, 0, 1, 1], [], []>} : vector<1x128xf32>, vector<128x128xf32>, vector<1x128xf32> -> vector<1x128xf32>
    %208 = vector.broadcast %207 : vector<1x128xf32> to vector<16x128xf32>
    %209 = arith.subf %199, %208 : vector<16x128xf32>
    %210 = arith.mulf %209, %209 : vector<16x128xf32>
    %cst_78 = arith.constant dense<0.000000e+00> : vector<128xf32>
    %211 = vector.multi_reduction <add>, %210, %cst_78 [0] : vector<16x128xf32> to vector<128xf32>
    %212 = vector.shape_cast %211 : vector<128xf32> to vector<1x128xf32>
    %c0_79 = arith.constant 0 : index
    %c0_80 = arith.constant 0 : index
    %213 = vector.load %arg6[%c0_79, %c0_80] : memref<128x128xf32, #tpu.memory_space<vmem>>, vector<128x128xf32>
    %cst_81 = arith.constant dense<0.000000e+00> : vector<1x128xf32>
    %214 = tpu.matmul %212, %213, %cst_81 {dimension_numbers = #tpu.dot_dimension_numbers<[1], [0], [0], [1], [0, 0, 1, 1], [], []>} : vector<1x128xf32>, vector<128x128xf32>, vector<1x128xf32> -> vector<1x128xf32>
    %cst_82 = arith.constant 9.99999974E-6 : f32
    %215 = vector.broadcast %cst_82 : f32 to vector<1x128xf32>
    %216 = arith.addf %214, %215 : vector<1x128xf32>
    %217 = math.rsqrt %216 : vector<1x128xf32>
    %218 = vector.broadcast %217 : vector<1x128xf32> to vector<16x128xf32>
    %219 = arith.mulf %209, %218 : vector<16x128xf32>
    %220 = vector.shape_cast %201 : vector<128xf32> to vector<1x128xf32>
    %221 = vector.broadcast %220 : vector<1x128xf32> to vector<16x128xf32>
    %222 = arith.mulf %219, %221 : vector<16x128xf32>
    %223 = vector.shape_cast %203 : vector<128xf32> to vector<1x128xf32>
    %224 = vector.broadcast %223 : vector<1x128xf32> to vector<16x128xf32>
    %225 = arith.addf %222, %224 : vector<16x128xf32>
    %226 = vector.broadcast %174 : vector<1x128xf32> to vector<16x128xf32>
    %227 = arith.mulf %225, %226 : vector<16x128xf32>
    %228 = vector.broadcast %175 : vector<1x128xf32> to vector<16x128xf32>
    %229 = arith.addf %227, %228 : vector<16x128xf32>
    %230 = arith.negf %229 : vector<16x128xf32>
    %231 = math.exp %230 : vector<16x128xf32>
    %cst_83 = arith.constant 1.000000e+00 : f32
    %232 = vector.broadcast %cst_83 : f32 to vector<16x128xf32>
    %233 = arith.addf %232, %231 : vector<16x128xf32>
    %234 = arith.divf %232, %233 : vector<16x128xf32>
    %235 = arith.mulf %229, %234 : vector<16x128xf32>
    %236 = arith.truncf %235 : vector<16x128xf32> to vector<16x128xbf16>
    %c1_84 = arith.constant 1 : index
    %c0_85 = arith.constant 0 : index
    %c0_86 = arith.constant 0 : index
    %237 = vector.load %arg5[%c1_84, %c0_85, %c0_86] : memref<2x128x384xbf16, #tpu.memory_space<vmem>>, vector<1x128x384xbf16>
    %238 = vector.shape_cast %237 : vector<1x128x384xbf16> to vector<128x384xbf16>
    %cst_87 = arith.constant dense<0.000000e+00> : vector<16x384xf32>
    %239 = tpu.matmul %236, %238, %cst_87 {dimension_numbers = #tpu.dot_dimension_numbers<[1], [0], [0], [1], [0, 0, 1, 1], [], []>} : vector<16x128xbf16>, vector<128x384xbf16>, vector<16x384xf32> -> vector<16x384xf32>
    %240 = vector.extract_strided_slice %239 {offsets = [0, 0], sizes = [16, 128], strides = [1, 1]} : vector<16x384xf32> to vector<16x128xf32>
    %241 = vector.extract_strided_slice %239 {offsets = [0, 128], sizes = [16, 128], strides = [1, 1]} : vector<16x384xf32> to vector<16x128xf32>
    %242 = vector.extract_strided_slice %239 {offsets = [0, 256], sizes = [16, 128], strides = [1, 1]} : vector<16x384xf32> to vector<16x128xf32>
    %c1_i32_88 = arith.constant 1 : i32
    %243 = tpu.dynamic_rotate %240 by %c1_i32_88 dim 0 : vector<16x128xf32>, i32 -> vector<16x128xf32>
    %cst_89 = arith.constant 0.000000e+00 : f32
    %244 = vector.shape_cast %2 : vector<16x1xi1> to vector<16x1xi1>
    %245 = vector.broadcast %244 : vector<16x1xi1> to vector<16x128xi1>
    %246 = vector.broadcast %cst_89 : f32 to vector<16x128xf32>
    %247 = arith.select %245, %243, %246 : vector<16x128xi1>, vector<16x128xf32>
    %c15_i32_90 = arith.constant 15 : i32
    %248 = tpu.dynamic_rotate %242 by %c15_i32_90 dim 0 : vector<16x128xf32>, i32 -> vector<16x128xf32>
    %cst_91 = arith.constant 0.000000e+00 : f32
    %249 = vector.shape_cast %4 : vector<16x1xi1> to vector<16x1xi1>
    %250 = vector.broadcast %249 : vector<16x1xi1> to vector<16x128xi1>
    %251 = vector.broadcast %cst_91 : f32 to vector<16x128xf32>
    %252 = arith.select %250, %248, %251 : vector<16x128xi1>, vector<16x128xf32>
    %253 = arith.addf %241, %247 : vector<16x128xf32>
    %254 = arith.addf %253, %252 : vector<16x128xf32>
    %c5_92 = arith.constant 5 : index
    %c0_93 = arith.constant 0 : index
    %255 = vector.load %arg8[%c5_92, %c0_93] : memref<8x128xf32, #tpu.memory_space<vmem>>, vector<1x128xf32>
    %256 = vector.shape_cast %255 : vector<1x128xf32> to vector<128xf32>
    %257 = vector.shape_cast %256 : vector<128xf32> to vector<1x128xf32>
    %258 = vector.broadcast %257 : vector<1x128xf32> to vector<16x128xf32>
    %259 = arith.addf %254, %258 : vector<16x128xf32>
    %c6_94 = arith.constant 6 : index
    %c0_95 = arith.constant 0 : index
    %260 = vector.load %arg8[%c6_94, %c0_95] : memref<8x128xf32, #tpu.memory_space<vmem>>, vector<1x128xf32>
    %261 = vector.shape_cast %260 : vector<1x128xf32> to vector<128xf32>
    %c7_96 = arith.constant 7 : index
    %c0_97 = arith.constant 0 : index
    %262 = vector.load %arg8[%c7_96, %c0_97] : memref<8x128xf32, #tpu.memory_space<vmem>>, vector<1x128xf32>
    %263 = vector.shape_cast %262 : vector<1x128xf32> to vector<128xf32>
    %cst_98 = arith.constant dense<0.000000e+00> : vector<128xf32>
    %264 = vector.multi_reduction <add>, %259, %cst_98 [0] : vector<16x128xf32> to vector<128xf32>
    %265 = vector.shape_cast %264 : vector<128xf32> to vector<1x128xf32>
    %c0_99 = arith.constant 0 : index
    %c0_100 = arith.constant 0 : index
    %266 = vector.load %arg6[%c0_99, %c0_100] : memref<128x128xf32, #tpu.memory_space<vmem>>, vector<128x128xf32>
    %cst_101 = arith.constant dense<0.000000e+00> : vector<1x128xf32>
    %267 = tpu.matmul %265, %266, %cst_101 {dimension_numbers = #tpu.dot_dimension_numbers<[1], [0], [0], [1], [0, 0, 1, 1], [], []>} : vector<1x128xf32>, vector<128x128xf32>, vector<1x128xf32> -> vector<1x128xf32>
    %268 = vector.broadcast %267 : vector<1x128xf32> to vector<16x128xf32>
    %269 = arith.subf %259, %268 : vector<16x128xf32>
    %270 = arith.mulf %269, %269 : vector<16x128xf32>
    %cst_102 = arith.constant dense<0.000000e+00> : vector<128xf32>
    %271 = vector.multi_reduction <add>, %270, %cst_102 [0] : vector<16x128xf32> to vector<128xf32>
    %272 = vector.shape_cast %271 : vector<128xf32> to vector<1x128xf32>
    %c0_103 = arith.constant 0 : index
    %c0_104 = arith.constant 0 : index
    %273 = vector.load %arg6[%c0_103, %c0_104] : memref<128x128xf32, #tpu.memory_space<vmem>>, vector<128x128xf32>
    %cst_105 = arith.constant dense<0.000000e+00> : vector<1x128xf32>
    %274 = tpu.matmul %272, %273, %cst_105 {dimension_numbers = #tpu.dot_dimension_numbers<[1], [0], [0], [1], [0, 0, 1, 1], [], []>} : vector<1x128xf32>, vector<128x128xf32>, vector<1x128xf32> -> vector<1x128xf32>
    %cst_106 = arith.constant 9.99999974E-6 : f32
    %275 = vector.broadcast %cst_106 : f32 to vector<1x128xf32>
    %276 = arith.addf %274, %275 : vector<1x128xf32>
    %277 = math.rsqrt %276 : vector<1x128xf32>
    %278 = vector.broadcast %277 : vector<1x128xf32> to vector<16x128xf32>
    %279 = arith.mulf %269, %278 : vector<16x128xf32>
    %280 = vector.shape_cast %261 : vector<128xf32> to vector<1x128xf32>
    %281 = vector.broadcast %280 : vector<1x128xf32> to vector<16x128xf32>
    %282 = arith.mulf %279, %281 : vector<16x128xf32>
    %283 = vector.shape_cast %263 : vector<128xf32> to vector<1x128xf32>
    %284 = vector.broadcast %283 : vector<1x128xf32> to vector<16x128xf32>
    %285 = arith.addf %282, %284 : vector<16x128xf32>
    %286 = arith.negf %285 : vector<16x128xf32>
    %287 = math.exp %286 : vector<16x128xf32>
    %cst_107 = arith.constant 1.000000e+00 : f32
    %288 = vector.broadcast %cst_107 : f32 to vector<16x128xf32>
    %289 = arith.addf %288, %287 : vector<16x128xf32>
    %290 = arith.divf %288, %289 : vector<16x128xf32>
    %291 = arith.mulf %285, %290 : vector<16x128xf32>
    %c0_108 = arith.constant 0 : index
    %c0_109 = arith.constant 0 : index
    %292 = vector.load %arg11[%c0_108, %c0_109] : memref<16x128xf32, #tpu.memory_space<vmem>>, vector<16x128xf32>
    %293 = arith.addf %291, %292 : vector<16x128xf32>
    %c0_110 = arith.constant 0 : index
    %c0_111 = arith.constant 0 : index
    %294 = vector.load %arg11[%c0_110, %c0_111] : memref<16x128xf32, #tpu.memory_space<vmem>>, vector<16x128xf32>
    tpu.vector_store %arg11[%c0_110, %c0_111], %293 {strides = array<i32>} : memref<16x128xf32, #tpu.memory_space<vmem>>, vector<16x128xf32>,
    return
  }
  func.func @transform_0(%arg0: i32) -> (i32, i32) {
    %c0_i32 = arith.constant 0 : i32
    %c0_i32_0 = arith.constant 0 : i32
    return %arg0, %c0_i32 : i32, i32
  }
  func.func @transform_1(%arg0: i32) -> (i32, i32) {
    %c0_i32 = arith.constant 0 : i32
    %c0_i32_0 = arith.constant 0 : i32
    %c0_i32_1 = arith.constant 0 : i32
    return %c0_i32, %c0_i32_0 : i32, i32
  }
  func.func @transform_2(%arg0: i32) -> (i32, i32) {
    %c0_i32 = arith.constant 0 : i32
    %c0_i32_0 = arith.constant 0 : i32
    %c0_i32_1 = arith.constant 0 : i32
    return %c0_i32, %c0_i32_0 : i32, i32
  }
  func.func @transform_3(%arg0: i32) -> (i32, i32) {
    %c0_i32 = arith.constant 0 : i32
    %c0_i32_0 = arith.constant 0 : i32
    %c0_i32_1 = arith.constant 0 : i32
    return %c0_i32, %c0_i32_0 : i32, i32
  }
  func.func @transform_4(%arg0: i32) -> (i32, i32, i32) {
    %c0_i32 = arith.constant 0 : i32
    %c0_i32_0 = arith.constant 0 : i32
    %c0_i32_1 = arith.constant 0 : i32
    %c0_i32_2 = arith.constant 0 : i32
    return %c0_i32, %c0_i32_0, %c0_i32_1 : i32, i32, i32
  }
  func.func @transform_5(%arg0: i32) -> (i32, i32) {
    %c0_i32 = arith.constant 0 : i32
    %c0_i32_0 = arith.constant 0 : i32
    %c0_i32_1 = arith.constant 0 : i32
    return %c0_i32, %c0_i32_0 : i32, i32
  }
  func.func @transform_6(%arg0: i32) -> (i32, i32) {
    %c0_i32 = arith.constant 0 : i32
    %c0_i32_0 = arith.constant 0 : i32
    %c0_i32_1 = arith.constant 0 : i32
    return %c0_i32, %c0_i32_0 : i32, i32
  }
  func.func @transform_7(%arg0: i32) -> (i32, i32) {
    %c0_i32 = arith.constant 0 : i32
    %c0_i32_0 = arith.constant 0 : i32
    %c0_i32_1 = arith.constant 0 : i32
    return %c0_i32, %c0_i32_0 : i32, i32
  }
  func.func @transform_8(%arg0: i32) -> (i32, i32) {
    %c0_i32 = arith.constant 0 : i32
    %c0_i32_0 = arith.constant 0 : i32
    %c0_i32_1 = arith.constant 0 : i32
    return %c0_i32, %c0_i32_0 : i32, i32
  }
  func.func @transform_9(%arg0: i32) -> (i32, i32) {
    %c0_i32 = arith.constant 0 : i32
    %c0_i32_0 = arith.constant 0 : i32
    %c0_i32_1 = arith.constant 0 : i32
    return %c0_i32, %c0_i32_0 : i32, i32
  }
  func.func @transform_10(%arg0: i32) -> (i32, i32) {
    %c0_i32 = arith.constant 0 : i32
    %c0_i32_0 = arith.constant 0 : i32
    return %arg0, %c0_i32 : i32, i32
  }
}

</mosaic_0001>

<llo_original>
// kernel: inverted_residual_forward.1
$region0: #{inverted_residual_forward.1}
  #allocation0 [shape = 'u32[]', space=smem, size = 0x4, offset = 0x4, fixed_abs, tag = 'smem constant byte address 0x4 - core index']
  #allocation1 [shape = 'u32[144,128]{1,0:T(1,128)}', space=vmem, size = 0x12000, scoped, tag = 'internal scratch']
  %s0 = inlined_call_operand.vmem [shape: f32[32,128], index: 0, kind: input, shape index: {}]
  %s1 = inlined_call_operand.vmem [shape: f32[2,8], index: 1, kind: input, shape index: {}]
  %s2 = inlined_call_operand.vmem [shape: bf16[128,256], index: 2, kind: input, shape index: {}]
  %s3 = inlined_call_operand.vmem [shape: bf16[256,128], index: 3, kind: input, shape index: {}]
  %s4 = inlined_call_operand.vmem [shape: bf16[2,128,384], index: 4, kind: input, shape index: {}]
  %s5 = inlined_call_operand.vmem [shape: f32[128,128], index: 5, kind: input, shape index: {}]
  %s6 = inlined_call_operand.vmem [shape: f32[16,256], index: 6, kind: input, shape index: {}]
  %s7 = inlined_call_operand.vmem [shape: f32[8,128], index: 7, kind: input, shape index: {}]
  %s8 = inlined_call_operand.vmem [shape: f32[256,8], index: 8, kind: input, shape index: {}]
  %s9 = inlined_call_operand.vmem [shape: f32[24,256], index: 9, kind: input, shape index: {}]
  %s10 = inlined_call_operand.vmem [shape: f32[32,128], index: 10, kind: output, shape index: {}]
  %s11 = sld [smem:[#allocation0]]
  $region73: #{inverted_residual_forward.1} parent=0
    _
  %s13 = ssub.s32 1, %s11
  %s14 = scalar_select 0, %s13, %s11
  loop: start=0, step=1, limit=4
  $region2: #{inverted_residual_forward.1} parent=0 // loop_pre_header
    _
  $region3: #{inverted_residual_forward.1} parent=0 // loop_header
    %s16 = sphi 0, %s20
    %p17 = scmp.ge.s32.totalorder %s16, 4
    %s26 = sphi 0, %s28
    %s29 = sphi 0, %s26
    %s30 = sphi 0, %s29
    %s46 = sphi 0, %s30
    %s50 = sphi 0, %s50
    %s52 = sphi 0, %s50
    %s53 = sphi 0, %s52
    %s67 = sphi 0, %s53
    %s71 = sphi 0, %s71
    %s73 = sphi 0, %s71
    %s74 = sphi 0, %s73
    %s88 = sphi 0, %s74
    %s92 = sphi 0, %s92
    %s94 = sphi 0, %s92
    %s95 = sphi 0, %s94
    %s109 = sphi 0, %s95
    %s113 = sphi 0, %s113
    %s115 = sphi 0, %s113
    %s116 = sphi 0, %s115
    %s130 = sphi 0, %s116
    %s134 = sphi 0, %s134
    %s136 = sphi 0, %s134
    %s137 = sphi 0, %s136
    %s151 = sphi 0, %s137
    %s155 = sphi 0, %s155
    %s157 = sphi 0, %s155
    %s158 = sphi 0, %s157
    %s172 = sphi 0, %s158
    %s176 = sphi 0, %s176
    %s178 = sphi 0, %s176
    %s179 = sphi 0, %s178
    %s193 = sphi 0, %s179
    %s197 = sphi 0, %s197
    %s199 = sphi 0, %s197
    %s200 = sphi 0, %s199
    %s214 = sphi 0, %s200
    %s218 = sphi 0, %s218
    %s220 = sphi 0, %s218
    %s221 = sphi 0, %s220
    %s235 = sphi 0, %s221
    %s241 = sphi 0, %s243
    %s244 = sphi 0, %s241
    %s245 = sphi 0, %s244
    %s261 = sphi 0, %s245
  $region4: #{inverted_residual_forward.1} parent=0 // loop_header_branch
    %19 = sbr.rel (%p17) target = $region8
  $region5: #{inverted_residual_forward.1} parent=0 // loop_body
    %s21 = ssub.s32 %s16, 1
    %s22 = ssub.s32 %s16, 2
    %s23 = sadd.s32 %s16, 1
    %s24 = ssub.s32 %s16, %s23
    %p25 = scmp.eq.s32.totalorder %s24, 0
    %s27 = sadd.s32 %s26, 1
    %s28 = scalar_select %p25, %s26, %s27
    %p31 = pneg %p25
    %p32 = scmp.eq.s32.totalorder %s16, 1
    %p33 = por %p31, %p32
    %p34 = scmp.ne.s32.totalorder %s26, %s29
    %p35 = scmp.eq.s32.totalorder %s16, 0
    %p36 = por %p34, %p35
    %p37 = scmp.ne.s32.totalorder %s26, %s29
    %p38 = scmp.eq.s32.totalorder %s21, 1
    %p39 = por %p37, %p38
    %p40 = scmp.ne.s32.totalorder %s29, %s30
    %p41 = scmp.eq.s32.totalorder %s21, 0
    %p42 = por %p40, %p41
    %p43 = scmp.ne.s32.totalorder %s29, %s30
    %p44 = scmp.eq.s32.totalorder %s22, 1
    %p45 = por %p43, %p44
    %p47 = scmp.ne.s32.totalorder %s30, %s46
    %p48 = scmp.eq.s32.totalorder %s22, 0
    %p49 = por %p47, %p48
    %s51 = sadd.s32 %s50, 1
    %p54 = scmp.eq.s32.totalorder %s16, 1
    %p55 = scmp.ne.s32.totalorder %s50, %s52
    %p56 = scmp.eq.s32.totalorder %s16, 0
    %p57 = por %p55, %p56
    %p58 = scmp.ne.s32.totalorder %s50, %s52
    %p59 = scmp.eq.s32.totalorder %s21, 1
    %p60 = por %p58, %p59
    %p61 = scmp.ne.s32.totalorder %s52, %s53
    %p62 = scmp.eq.s32.totalorder %s21, 0
    %p63 = por %p61, %p62
    %p64 = scmp.ne.s32.totalorder %s52, %s53
    %p65 = scmp.eq.s32.totalorder %s22, 1
    %p66 = por %p64, %p65
    %p68 = scmp.ne.s32.totalorder %s53, %s67
    %p69 = scmp.eq.s32.totalorder %s22, 0
    %p70 = por %p68, %p69
    %s72 = sadd.s32 %s71, 1
    %p75 = scmp.eq.s32.totalorder %s16, 1
    %p76 = scmp.ne.s32.totalorder %s71, %s73
    %p77 = scmp.eq.s32.totalorder %s16, 0
    %p78 = por %p76, %p77
    %p79 = scmp.ne.s32.totalorder %s71, %s73
    %p80 = scmp.eq.s32.totalorder %s21, 1
    %p81 = por %p79, %p80
    %p82 = scmp.ne.s32.totalorder %s73, %s74
    %p83 = scmp.eq.s32.totalorder %s21, 0
    %p84 = por %p82, %p83
    %p85 = scmp.ne.s32.totalorder %s73, %s74
    %p86 = scmp.eq.s32.totalorder %s22, 1
    %p87 = por %p85, %p86
    %p89 = scmp.ne.s32.totalorder %s74, %s88
    %p90 = scmp.eq.s32.totalorder %s22, 0
    %p91 = por %p89, %p90
    %s93 = sadd.s32 %s92, 1
    %p96 = scmp.eq.s32.totalorder %s16, 1
    %p97 = scmp.ne.s32.totalorder %s92, %s94
    %p98 = scmp.eq.s32.totalorder %s16, 0
    %p99 = por %p97, %p98
    %p100 = scmp.ne.s32.totalorder %s92, %s94
    %p101 = scmp.eq.s32.totalorder %s21, 1
    %p102 = por %p100, %p101
    %p103 = scmp.ne.s32.totalorder %s94, %s95
    %p104 = scmp.eq.s32.totalorder %s21, 0
    %p105 = por %p103, %p104
    %p106 = scmp.ne.s32.totalorder %s94, %s95
    %p107 = scmp.eq.s32.totalorder %s22, 1
    %p108 = por %p106, %p107
    %p110 = scmp.ne.s32.totalorder %s95, %s109
    %p111 = scmp.eq.s32.totalorder %s22, 0
    %p112 = por %p110, %p111
    %s114 = sadd.s32 %s113, 1
    %p117 = scmp.eq.s32.totalorder %s16, 1
    %p118 = scmp.ne.s32.totalorder %s113, %s115
    %p119 = scmp.eq.s32.totalorder %s16, 0
    %p120 = por %p118, %p119
    %p121 = scmp.ne.s32.totalorder %s113, %s115
    %p122 = scmp.eq.s32.totalorder %s21, 1
    %p123 = por %p121, %p122
    %p124 = scmp.ne.s32.totalorder %s115, %s116
    %p125 = scmp.eq.s32.totalorder %s21, 0
    %p126 = por %p124, %p125
    %p127 = scmp.ne.s32.totalorder %s115, %s116
    %p128 = scmp.eq.s32.totalorder %s22, 1
    %p129 = por %p127, %p128
    %p131 = scmp.ne.s32.totalorder %s116, %s130
    %p132 = scmp.eq.s32.totalorder %s22, 0
    %p133 = por %p131, %p132
    %s135 = sadd.s32 %s134, 1
    %p138 = scmp.eq.s32.totalorder %s16, 1
    %p139 = scmp.ne.s32.totalorder %s134, %s136
    %p140 = scmp.eq.s32.totalorder %s16, 0
    %p141 = por %p139, %p140
    %p142 = scmp.ne.s32.totalorder %s134, %s136
    %p143 = scmp.eq.s32.totalorder %s21, 1
    %p144 = por %p142, %p143
    %p145 = scmp.ne.s32.totalorder %s136, %s137
    %p146 = scmp.eq.s32.totalorder %s21, 0
    %p147 = por %p145, %p146
    %p148 = scmp.ne.s32.totalorder %s136, %s137
    %p149 = scmp.eq.s32.totalorder %s22, 1
    %p150 = por %p148, %p149
    %p152 = scmp.ne.s32.totalorder %s137, %s151
    %p153 = scmp.eq.s32.totalorder %s22, 0
    %p154 = por %p152, %p153
    %s156 = sadd.s32 %s155, 1
    %p159 = scmp.eq.s32.totalorder %s16, 1
    %p160 = scmp.ne.s32.totalorder %s155, %s157
    %p161 = scmp.eq.s32.totalorder %s16, 0
    %p162 = por %p160, %p161
    %p163 = scmp.ne.s32.totalorder %s155, %s157
    %p164 = scmp.eq.s32.totalorder %s21, 1
    %p165 = por %p163, %p164
    %p166 = scmp.ne.s32.totalorder %s157, %s158
    %p167 = scmp.eq.s32.totalorder %s21, 0
    %p168 = por %p166, %p167
    %p169 = scmp.ne.s32.totalorder %s157, %s158
    %p170 = scmp.eq.s32.totalorder %s22, 1
    %p171 = por %p169, %p170
    %p173 = scmp.ne.s32.totalorder %s158, %s172
    %p174 = scmp.eq.s32.totalorder %s22, 0
    %p175 = por %p173, %p174
    %s177 = sadd.s32 %s176, 1
    %p180 = scmp.eq.s32.totalorder %s16, 1
    %p181 = scmp.ne.s32.totalorder %s176, %s178
    %p182 = scmp.eq.s32.totalorder %s16, 0
    %p183 = por %p181, %p182
    %p184 = scmp.ne.s32.totalorder %s176, %s178
    %p185 = scmp.eq.s32.totalorder %s21, 1
    %p186 = por %p184, %p185
    %p187 = scmp.ne.s32.totalorder %s178, %s179
    %p188 = scmp.eq.s32.totalorder %s21, 0
    %p189 = por %p187, %p188
    %p190 = scmp.ne.s32.totalorder %s178, %s179
    %p191 = scmp.eq.s32.totalorder %s22, 1
    %p192 = por %p190, %p191
    %p194 = scmp.ne.s32.totalorder %s179, %s193
    %p195 = scmp.eq.s32.totalorder %s22, 0
    %p196 = por %p194, %p195
    %s198 = sadd.s32 %s197, 1
    %p201 = scmp.eq.s32.totalorder %s16, 1
    %p202 = scmp.ne.s32.totalorder %s197, %s199
    %p203 = scmp.eq.s32.totalorder %s16, 0
    %p204 = por %p202, %p203
    %p205 = scmp.ne.s32.totalorder %s197, %s199
    %p206 = scmp.eq.s32.totalorder %s21, 1
    %p207 = por %p205, %p206
    %p208 = scmp.ne.s32.totalorder %s199, %s200
    %p209 = scmp.eq.s32.totalorder %s21, 0
    %p210 = por %p208, %p209
    %p211 = scmp.ne.s32.totalorder %s199, %s200
    %p212 = scmp.eq.s32.totalorder %s22, 1
    %p213 = por %p211, %p212
    %p215 = scmp.ne.s32.totalorder %s200, %s214
    %p216 = scmp.eq.s32.totalorder %s22, 0
    %p217 = por %p215, %p216
    %s219 = sadd.s32 %s218, 1
    %p222 = scmp.eq.s32.totalorder %s16, 1
    %p223 = scmp.ne.s32.totalorder %s218, %s220
    %p224 = scmp.eq.s32.totalorder %s16, 0
    %p225 = por %p223, %p224
    %p226 = scmp.ne.s32.totalorder %s218, %s220
    %p227 = scmp.eq.s32.totalorder %s21, 1
    %p228 = por %p226, %p227
    %p229 = scmp.ne.s32.totalorder %s220, %s221
    %p230 = scmp.eq.s32.totalorder %s21, 0
    %p231 = por %p229, %p230
    %p232 = scmp.ne.s32.totalorder %s220, %s221
    %p233 = scmp.eq.s32.totalorder %s22, 1
    %p234 = por %p232, %p233
    %p236 = scmp.ne.s32.totalorder %s221, %s235
    %p237 = scmp.eq.s32.totalorder %s22, 0
    %p238 = por %p236, %p237
    %s239 = ssub.s32 %s16, %s23
    %p240 = scmp.eq.s32.totalorder %s239, 0
    %s242 = sadd.s32 %s241, 1
    %s243 = scalar_select %p240, %s241, %s242
    %p246 = pneg %p240
    %p247 = scmp.eq.s32.totalorder %s16, 1
    %p248 = por %p246, %p247
    %p249 = scmp.ne.s32.totalorder %s241, %s244
    %p250 = scmp.eq.s32.totalorder %s16, 0
    %p251 = por %p249, %p250
    %p252 = scmp.ne.s32.totalorder %s241, %s244
    %p253 = scmp.eq.s32.totalorder %s21, 1
    %p254 = por %p252, %p253
    %p255 = scmp.ne.s32.totalorder %s244, %s245
    %p256 = scmp.eq.s32.totalorder %s21, 0
    %p257 = por %p255, %p256
    %p258 = scmp.ne.s32.totalorder %s244, %s245
    %p259 = scmp.eq.s32.totalorder %s22, 1
    %p260 = por %p258, %p259
    %p262 = scmp.ne.s32.totalorder %s245, %s261
    %p263 = scmp.eq.s32.totalorder %s22, 0
    %p264 = por %p262, %p263
    %p265 = scmp.le.s32.totalorder 1, %s16
    %p266 = scmp.lt.s32.totalorder %s16, 3
    %p267 = pnand %p265, %p266
    %p268 = pneg %p267
    // Predicated region
    $region9: #{inverted_residual_forward.1} parent=5 // pred_check
      _
    $region10: #{inverted_residual_forward.1} parent=5 // pred_check_branch
      %270 = sbr.rel (%p267) target = $region12
    $region11: #{inverted_residual_forward.1} parent=5 // pred_region
      %s271 = ssub.s32 %s16, 1
      // Predicated region
      $region13: #{inverted_residual_forward.1} parent=11 // pred_check
        %p272 = pneg %p63
      $region14: #{inverted_residual_forward.1} parent=11 // pred_check_branch
        %274 = sbr.rel (%p272) target = $region16
      $region15: #{inverted_residual_forward.1} parent=11 // pred_region
        _
      $region16: #{inverted_residual_forward.1} parent=11 // pred_fallthru
        _
      // Predicated region
      $region17: #{inverted_residual_forward.1} parent=11 // pred_check
        %p275 = pneg %p84
      $region18: #{inverted_residual_forward.1} parent=11 // pred_check_branch
        %277 = sbr.rel (%p275) target = $region20
      $region19: #{inverted_residual_forward.1} parent=11 // pred_region
        _
      $region20: #{inverted_residual_forward.1} parent=11 // pred_fallthru
        _
      // Predicated region
      $region21: #{inverted_residual_forward.1} parent=11 // pred_check
        %p278 = pneg %p105
      $region22: #{inverted_residual_forward.1} parent=11 // pred_check_branch
        %280 = sbr.rel (%p278) target = $region24
      $region23: #{inverted_residual_forward.1} parent=11 // pred_region
        _
      $region24: #{inverted_residual_forward.1} parent=11 // pred_fallthru
        _
      // Predicated region
      $region25: #{inverted_residual_forward.1} parent=11 // pred_check
        %p281 = pneg %p126
      $region26: #{inverted_residual_forward.1} parent=11 // pred_check_branch
        %283 = sbr.rel (%p281) target = $region28
      $region27: #{inverted_residual_forward.1} parent=11 // pred_region
        _
      $region28: #{inverted_residual_forward.1} parent=11 // pred_fallthru
        _
      // Predicated region
      $region29: #{inverted_residual_forward.1} parent=11 // pred_check
        %p284 = pneg %p147
      $region30: #{inverted_residual_forward.1} parent=11 // pred_check_branch
        %286 = sbr.rel (%p284) target = $region32
      $region31: #{inverted_residual_forward.1} parent=11 // pred_region
        _
      $region32: #{inverted_residual_forward.1} parent=11 // pred_fallthru
        _
      // Predicated region
      $region33: #{inverted_residual_forward.1} parent=11 // pred_check
        %p287 = pneg %p168
      $region34: #{inverted_residual_forward.1} parent=11 // pred_check_branch
        %289 = sbr.rel (%p287) target = $region36
      $region35: #{inverted_residual_forward.1} parent=11 // pred_region
        _
      $region36: #{inverted_residual_forward.1} parent=11 // pred_fallthru
        _
      // Predicated region
      $region37: #{inverted_residual_forward.1} parent=11 // pred_check
        %p290 = pneg %p189
      $region38: #{inverted_residual_forward.1} parent=11 // pred_check_branch
        %292 = sbr.rel (%p290) target = $region40
      $region39: #{inverted_residual_forward.1} parent=11 // pred_region
        _
      $region40: #{inverted_residual_forward.1} parent=11 // pred_fallthru
        _
      // Predicated region
      $region41: #{inverted_residual_forward.1} parent=11 // pred_check
        %p293 = pneg %p210
      $region42: #{inverted_residual_forward.1} parent=11 // pred_check_branch
        %295 = sbr.rel (%p293) target = $region44
      $region43: #{inverted_residual_forward.1} parent=11 // pred_region
        _
      $region44: #{inverted_residual_forward.1} parent=11 // pred_fallthru
        _
      // Predicated region
      $region45: #{inverted_residual_forward.1} parent=11 // pred_check
        %p296 = pneg %p231
      $region46: #{inverted_residual_forward.1} parent=11 // pred_check_branch
        %298 = sbr.rel (%p296) target = $region48
      $region47: #{inverted_residual_forward.1} parent=11 // pred_region
        _
      $region48: #{inverted_residual_forward.1} parent=11 // pred_fallthru
        _
    $region12: #{inverted_residual_forward.1} parent=5 // pred_fallthru
      _
    %p299 = scmp.lt.s32.totalorder %s16, 2
    // Predicated region
    $region49: #{inverted_residual_forward.1} parent=5 // pred_check
      %p300 = pneg %p299
    $region50: #{inverted_residual_forward.1} parent=5 // pred_check_branch
      %302 = sbr.rel (%p300) target = $region52
    $region51: #{inverted_residual_forward.1} parent=5 // pred_region
      // Predicated region
      $region53: #{inverted_residual_forward.1} parent=51 // pred_check
        %p303 = pneg %p36
      $region54: #{inverted_residual_forward.1} parent=51 // pred_check_branch
        %305 = sbr.rel (%p303) target = $region56
      $region55: #{inverted_residual_forward.1} parent=51 // pred_region
        %s306 = smul.u32 2, %s16
        %p307 = scmp.lt.s32.totalorder %s306, 3
        %s308 = scalar_select %p307, %s306, 3
        %s309 = smul.addr %s308, 8
        %s310 = scalar_lea.vmem %s0, %s309
        %s311 = smul.u32 2, %s16
      $region56: #{inverted_residual_forward.1} parent=51 // pred_fallthru
        _
    $region52: #{inverted_residual_forward.1} parent=5 // pred_fallthru
      _
    %p312 = scmp.le.s32.totalorder 1, %s16
    %p313 = scmp.lt.s32.totalorder %s16, 3
    %p314 = pnand %p312, %p313
    %p315 = pneg %p314
    // Predicated region
    $region57: #{inverted_residual_forward.1} parent=5 // pred_check
      _
    $region58: #{inverted_residual_forward.1} parent=5 // pred_check_branch
      %317 = sbr.rel (%p314) target = $region60
    $region59: #{inverted_residual_forward.1} parent=5 // pred_region
      %s318 = ssub.s32 %s16, 1
      %s319 = smul.u32 2, %s21
      %p320 = scmp.lt.s32.totalorder %s319, 3
      %s321 = scalar_select %p320, %s319, 3
      %s322 = smul.addr %s321, 8
      %s323 = scalar_lea.vmem %s0, %s322
      %p324 = pneg %p42
      %p325 = pneg %p39
      %p326 = pneg %p63
      %p327 = pneg %p60
      %p328 = pneg %p84
      %p329 = pneg %p81
      %p330 = pneg %p105
      %p331 = pneg %p102
      %p332 = pneg %p126
      %p333 = pneg %p123
      %p334 = pneg %p147
      %p335 = pneg %p144
      %p336 = pneg %p168
      %p337 = pneg %p165
      %p338 = pneg %p189
      %p339 = pneg %p186
      %p340 = pneg %p210
      %p341 = pneg %p207
      %p342 = pneg %p231
      %p343 = pneg %p228
      %p344 = pneg %p257
      %p345 = pneg %p254
      %s346 = smul.u32 2, %s21
      %p347 = scmp.lt.s32.totalorder %s346, 3
      %s348 = scalar_select %p347, %s346, 3
      %s349 = smul.addr %s348, 8
      %s350 = scalar_lea.vmem %s10, %s349
      %s351 = smul.u32 2, %s21
      %p352 = scmp.lt.s32.totalorder %s351, 3
      %s353 = scalar_select %p352, %s351, 3
      %s354 = smul.addr %s353, 8
      %s355 = scalar_lea.vmem %s0, %s354
      %s356 = smul.u32 2, %s21
      %s357 = smul.u32 2, %s21
      %p358 = scmp.lt.s32.totalorder %s357, 3
      %s359 = scalar_select %p358, %s357, 3
      %s360 = smul.addr %s359, 8
      %s361 = scalar_lea.vmem %s10, %s360
      %s362 = smul.u32 2, %s21
      %v364 = vlaneseq
      %v365 = vshrl.u32 %v364, 7
      %v366 = vadd.s32 %v365, 8
      %vm367 = vcmp.gt.s32.totalorder %v365, 0
      %vm368 = vcmp.gt.s32.totalorder %v366, 0
      %vm369 = vcmp.lt.s32.totalorder %v365, 15
      %vm370 = vcmp.lt.s32.totalorder %v366, 15
      %v371 = vld [vmem:[%s355] sm:$0xff]
      %v372 = vld [vmem:[%s355 + $0x8] sm:$0xff]
      %v373 = vpack.c.bf16 %v372, %v371
      %v374 = vld [vmem:[%s2] sm:$0xff]
      %v375 = vld [vmem:[%s2 + $0x8] sm:$0xff]
      %v376 = vld [vmem:[%s2 + $0x10] sm:$0xff]
      %v377 = vld [vmem:[%s2 + $0x18] sm:$0xff]
      %v378 = vld [vmem:[%s2 + $0x20] sm:$0xff]
      %v379 = vld [vmem:[%s2 + $0x28] sm:$0xff]
      %v380 = vld [vmem:[%s2 + $0x30] sm:$0xff]
      %v381 = vld [vmem:[%s2 + $0x38] sm:$0xff]
      %v382 = vld [vmem:[%s2 + $0x40] sm:$0xff]
      %v383 = vld [vmem:[%s2 + $0x48] sm:$0xff]
      %v384 = vld [vmem:[%s2 + $0x50] sm:$0xff]
      %v385 = vld [vmem:[%s2 + $0x58] sm:$0xff]
      %v386 = vld [vmem:[%s2 + $0x60] sm:$0xff]
      %v387 = vld [vmem:[%s2 + $0x68] sm:$0xff]
      %v388 = vld [vmem:[%s2 + $0x70] sm:$0xff]
      %v389 = vld [vmem:[%s2 + $0x78] sm:$0xff]
      %v406 = vunpack.c.l.b16 %v374
      %v407 = vunpack.c.h.b16 %v374
      %v408 = vunpack.c.l.b16 %v375
      %v409 = vunpack.c.h.b16 %v375
      %v410 = vunpack.c.l.b16 %v376
      %v411 = vunpack.c.h.b16 %v376
      %v412 = vunpack.c.l.b16 %v377
      %v413 = vunpack.c.h.b16 %v377
      %v414 = vunpack.c.l.b16 %v378
      %v415 = vunpack.c.h.b16 %v378
      %v416 = vunpack.c.l.b16 %v379
      %v417 = vunpack.c.h.b16 %v379
      %v418 = vunpack.c.l.b16 %v380
      %v419 = vunpack.c.h.b16 %v380
      %v420 = vunpack.c.l.b16 %v381
      %v421 = vunpack.c.h.b16 %v381
      %v422 = vunpack.c.l.b16 %v382
      %v423 = vunpack.c.h.b16 %v382
      %v424 = vunpack.c.l.b16 %v383
      %v425 = vunpack.c.h.b16 %v383
      %v426 = vunpack.c.l.b16 %v384
      %v427 = vunpack.c.h.b16 %v384
      %v428 = vunpack.c.l.b16 %v385
      %v429 = vunpack.c.h.b16 %v385
      %v430 = vunpack.c.l.b16 %v386
      %v431 = vunpack.c.h.b16 %v386
      %v432 = vunpack.c.l.b16 %v387
      %v433 = vunpack.c.h.b16 %v387
      %v434 = vunpack.c.l.b16 %v388
      %v435 = vunpack.c.h.b16 %v388
      %v436 = vunpack.c.l.b16 %v389
      %v437 = vunpack.c.h.b16 %v389
      %v438 = vpack.c.b16 %v408, %v406
      %v439 = vpack.c.b16 %v409, %v407
      %v440 = vpack.c.b16 %v412, %v410
      %v441 = vpack.c.b16 %v413, %v411
      %v442 = vpack.c.b16 %v416, %v414
      %v443 = vpack.c.b16 %v417, %v415
      %v444 = vpack.c.b16 %v420, %v418
      %v445 = vpack.c.b16 %v421, %v419
      %v446 = vpack.c.b16 %v424, %v422
      %v447 = vpack.c.b16 %v425, %v423
      %v448 = vpack.c.b16 %v428, %v426
      %v449 = vpack.c.b16 %v429, %v427
      %v450 = vpack.c.b16 %v432, %v430
      %v451 = vpack.c.b16 %v433, %v431
      %v452 = vpack.c.b16 %v436, %v434
      %v453 = vpack.c.b16 %v437, %v435
      %470 = vmatprep.subr.bf16.mxu0 %v439
      %471 = vmatpush1.bf16.msra.mxu0 %v438
      %472 = vmatprep.subr.bf16.mxu0 %v441
      %473 = vmatpush1.bf16.msra.mxu0 %v440
      %474 = vmatprep.subr.bf16.mxu0 %v443
      %475 = vmatpush1.bf16.msra.mxu0 %v442
      %476 = vmatprep.subr.bf16.mxu0 %v445
      %477 = vmatpush1.bf16.msra.mxu0 %v444
      %478 = vmatprep.subr.bf16.mxu0 %v447
      %479 = vmatpush1.bf16.msra.mxu0 %v446
      %480 = vmatprep.subr.bf16.mxu0 %v449
      %481 = vmatpush1.bf16.msra.mxu0 %v448
      %482 = vmatprep.subr.bf16.mxu0 %v451
      %483 = vmatpush1.bf16.msra.mxu0 %v450
      %484 = vmatprep.subr.bf16.mxu0 %v453
      %485 = vmatpush1.bf16.msra.mxu0 %v452
      %486 = vmatprep.subr.bf16.mxu0 0
      %487 = vmatpush1.bf16.msra.mxu0 0
      %488 = vmatprep.subr.bf16.mxu0 0
      %489 = vmatpush1.bf16.msra.mxu0 0
      %490 = vmatprep.subr.bf16.mxu0 0
      %491 = vmatpush1.bf16.msra.mxu0 0
      %492 = vmatprep.subr.bf16.mxu0 0
      %493 = vmatpush1.bf16.msra.mxu0 0
      %494 = vmatprep.subr.bf16.mxu0 0
      %495 = vmatpush1.bf16.msra.mxu0 0
      %496 = vmatprep.subr.bf16.mxu0 0
      %497 = vmatpush1.bf16.msra.mxu0 0
      %498 = vmatprep.subr.bf16.mxu0 0
      %499 = vmatpush1.bf16.msra.mxu0 0
      %500 = vmatprep.subr.bf16.mxu0 0
      %501 = vmatpush1.bf16.msra.mxu0 0
      %502 = vmatprep.mubr.bf16.mxu0 0
      %503 = vmatmul.mubr.bf16.gmra.mrb[0].mxu0 %v373
      %v504 = vpop.f32.mrb[0].mxu0
      %v505 = vadd.f32 0.0, %v504
      %v506 = vpop.f32.mrb[0].mxu0
      %v507 = vadd.f32 0.0, %v506
      %v508 = vpop.f32.mrb[0].mxu0
      %v509 = vadd.f32 0.0, %v508
      %v510 = vpop.f32.mrb[0].mxu0
      %v511 = vadd.f32 0.0, %v510
      %512 = vdwg.mxu0
      %v513 = vld [vmem:[%s6] ss:$8 sm:$0x3]
      %v515 = vlaneseq
      %v516 = vshrl.u32 %v515, 7
      %v517 = vsub.s32 0, %v516
      %v518 = vrot.slane %v513, %v517
      %v519 = vlaneseq
      %v520 = vshrl.u32 %v519, 7
      %v521 = vsub.s32 1, %v520
      %v522 = vrot.slane %v513, %v521
      %v525 = vmul.f32 %v505, %v518
      %v526 = vmul.f32 %v507, %v522
      %v527 = vmul.f32 %v509, %v518
      %v528 = vmul.f32 %v511, %v522
      %s529 = scalar_lea.vmem %s6, 1
      %v530 = vld [vmem:[%s529] ss:$8 sm:$0x3]
      %v532 = vlaneseq
      %v533 = vshrl.u32 %v532, 7
      %v534 = vsub.s32 0, %v533
      %v535 = vrot.slane %v530, %v534
      %v536 = vlaneseq
      %v537 = vshrl.u32 %v536, 7
      %v538 = vsub.s32 1, %v537
      %v539 = vrot.slane %v530, %v538
      %v542 = vadd.f32 %v525, %v535
      %v543 = vadd.f32 %v526, %v539
      %v544 = vadd.f32 %v527, %v535
      %v545 = vadd.f32 %v528, %v539
      %v546 = vadd.f32 %v542, 3.0
      %v547 = vadd.f32 %v543, 3.0
      %v548 = vadd.f32 %v544, 3.0
      %v549 = vadd.f32 %v545, 3.0
      %v550 = vmax.f32 %v546, 0.0
      %v551 = vmax.f32 %v547, 0.0
      %v552 = vmax.f32 %v548, 0.0
      %v553 = vmax.f32 %v549, 0.0
      %v554 = vmin.f32 %v550, 6.0
      %v555 = vmin.f32 %v551, 6.0
      %v556 = vmin.f32 %v552, 6.0
      %v557 = vmin.f32 %v553, 6.0
      %v558 = vmul.f32 %v554, 0.16666667
      %v559 = vmul.f32 %v555, 0.16666667
      %v560 = vmul.f32 %v556, 0.16666667
      %v561 = vmul.f32 %v557, 0.16666667
      %v562 = vmul.f32 %v542, %v558
      %v563 = vmul.f32 %v543, %v559
      %v564 = vmul.f32 %v544, %v560
      %v565 = vmul.f32 %v545, %v561
      %566 = vrot.lane.b32.xlu0 %v562, 16
      %v567 = vpop.permute.xlu0 %566
      %568 = vrot.lane.b32.xlu0 %v564, 16
      %v569 = vpop.permute.xlu0 %568
      %570 = vrot.lane.b32.xlu0 %v563, 16
      %v571 = vpop.permute.xlu0 %570
      %572 = vrot.lane.b32.xlu0 %v565, 16
      %v573 = vpop.permute.xlu0 %572
      %v574 = vlaneseq
      %v575 = vand.u32 %v574, 127
      %vm576 = vcmp.lt.s32.totalorder %v575, 16
      %v577 = vsel %vm576, %v567, %v571
      %v578 = vsel %vm576, %v569, %v573
      %v579 = vsel %vm576, %v571, %v567
      %v580 = vsel %vm576, %v573, %v569
      %581 = vrot.lane.b32.xlu0 %v562, 112
      %v582 = vpop.permute.xlu0 %581
      %583 = vrot.lane.b32.xlu0 %v564, 112
      %v584 = vpop.permute.xlu0 %583
      %585 = vrot.lane.b32.xlu0 %v563, 112
      %v586 = vpop.permute.xlu0 %585
      %587 = vrot.lane.b32.xlu0 %v565, 112
      %v588 = vpop.permute.xlu0 %587
      %vm589 = vcmp.lt.s32.totalorder %v575, 112
      %v590 = vsel %vm589, %v582, %v586
      %v591 = vsel %vm589, %v584, %v588
      %v592 = vsel %vm589, %v586, %v582
      %v593 = vsel %vm589, %v588, %v584
      %s594 = scalar_lea.vmem %s6, 6
      %v595 = vld [vmem:[%s594] ss:$8 sm:$0x3]
      %v597 = vlaneseq
      %v598 = vshrl.u32 %v597, 7
      %v599 = vsub.s32 0, %v598
      %v600 = vrot.slane %v595, %v599
      %v601 = vlaneseq
      %v602 = vshrl.u32 %v601, 7
      %v603 = vsub.s32 1, %v602
      %v604 = vrot.slane %v595, %v603
      %v607 = vmul.f32 %v579, %v600
      %v608 = vmul.f32 %v577, %v604
      %v609 = vmul.f32 %v580, %v600
      %v610 = vmul.f32 %v578, %v604
      %s611 = scalar_lea.vmem %s6, 7
      %v612 = vld [vmem:[%s611] ss:$8 sm:$0x3]
      %v614 = vlaneseq
      %v615 = vshrl.u32 %v614, 7
      %v616 = vsub.s32 0, %v615
      %v617 = vrot.slane %v612, %v616
      %v618 = vlaneseq
      %v619 = vshrl.u32 %v618, 7
      %v620 = vsub.s32 1, %v619
      %v621 = vrot.slane %v612, %v620
      %v624 = vmul.f32 %v562, %v617
      %v625 = vmul.f32 %v563, %v621
      %v626 = vmul.f32 %v564, %v617
      %v627 = vmul.f32 %v565, %v621
      %v628 = vadd.f32 %v607, %v624
      %v629 = vadd.f32 %v608, %v625
      %v630 = vadd.f32 %v609, %v626
      %v631 = vadd.f32 %v610, %v627
      %s632 = scalar_lea.vmem %s6, 16
      %v633 = vld [vmem:[%s632] ss:$8 sm:$0x3]
      %v635 = vlaneseq
      %v636 = vshrl.u32 %v635, 7
      %v637 = vsub.s32 0, %v636
      %v638 = vrot.slane %v633, %v637
      %v639 = vlaneseq
      %v640 = vshrl.u32 %v639, 7
      %v641 = vsub.s32 1, %v640
      %v642 = vrot.slane %v633, %v641
      %v645 = vmul.f32 %v590, %v638
      %v646 = vmul.f32 %v592, %v642
      %v647 = vmul.f32 %v591, %v638
      %v648 = vmul.f32 %v593, %v642
      %v649 = vadd.f32 %v628, %v645
      %v650 = vadd.f32 %v629, %v646
      %v651 = vadd.f32 %v630, %v647
      %v652 = vadd.f32 %v631, %v648
      %s653 = scalar_lea.vmem %s6, 17
      %v654 = vld [vmem:[%s653] ss:$8 sm:$0x3]
      %v656 = vlaneseq
      %v657 = vshrl.u32 %v656, 7
      %v658 = vsub.s32 0, %v657
      %v659 = vrot.slane %v654, %v658
      %v660 = vlaneseq
      %v661 = vshrl.u32 %v660, 7
      %v662 = vsub.s32 1, %v661
      %v663 = vrot.slane %v654, %v662
      %v666 = vmul.f32 %v579, %v659
      %v667 = vmul.f32 %v577, %v663
      %v668 = vmul.f32 %v580, %v659
      %v669 = vmul.f32 %v578, %v663
      %s670 = scalar_lea.vmem %s6, 18
      %v671 = vld [vmem:[%s670] ss:$8 sm:$0x3]
      %v673 = vlaneseq
      %v674 = vshrl.u32 %v673, 7
      %v675 = vsub.s32 0, %v674
      %v676 = vrot.slane %v671, %v675
      %v677 = vlaneseq
      %v678 = vshrl.u32 %v677, 7
      %v679 = vsub.s32 1, %v678
      %v680 = vrot.slane %v671, %v679
      %v683 = vmul.f32 %v562, %v676
      %v684 = vmul.f32 %v563, %v680
      %v685 = vmul.f32 %v564, %v676
      %v686 = vmul.f32 %v565, %v680
      %v687 = vadd.f32 %v666, %v683
      %v688 = vadd.f32 %v667, %v684
      %v689 = vadd.f32 %v668, %v685
      %v690 = vadd.f32 %v669, %v686
      %s691 = scalar_lea.vmem %s6, 19
      %v692 = vld [vmem:[%s691] ss:$8 sm:$0x3]
      %v694 = vlaneseq
      %v695 = vshrl.u32 %v694, 7
      %v696 = vsub.s32 0, %v695
      %v697 = vrot.slane %v692, %v696
      %v698 = vlaneseq
      %v699 = vshrl.u32 %v698, 7
      %v700 = vsub.s32 1, %v699
      %v701 = vrot.slane %v692, %v700
      %v704 = vmul.f32 %v590, %v697
      %v705 = vmul.f32 %v592, %v701
      %v706 = vmul.f32 %v591, %v697
      %v707 = vmul.f32 %v593, %v701
      %v708 = vadd.f32 %v687, %v704
      %v709 = vadd.f32 %v688, %v705
      %v710 = vadd.f32 %v689, %v706
      %v711 = vadd.f32 %v690, %v707
      %s712 = scalar_lea.vmem %s6, 20
      %v713 = vld [vmem:[%s712] ss:$8 sm:$0x3]
      %v715 = vlaneseq
      %v716 = vshrl.u32 %v715, 7
      %v717 = vsub.s32 0, %v716
      %v718 = vrot.slane %v713, %v717
      %v719 = vlaneseq
      %v720 = vshrl.u32 %v719, 7
      %v721 = vsub.s32 1, %v720
      %v722 = vrot.slane %v713, %v721
      %v725 = vmul.f32 %v579, %v718
      %v726 = vmul.f32 %v577, %v722
      %v727 = vmul.f32 %v580, %v718
      %v728 = vmul.f32 %v578, %v722
      %s729 = scalar_lea.vmem %s6, 21
      %v730 = vld [vmem:[%s729] ss:$8 sm:$0x3]
      %v732 = vlaneseq
      %v733 = vshrl.u32 %v732, 7
      %v734 = vsub.s32 0, %v733
      %v735 = vrot.slane %v730, %v734
      %v736 = vlaneseq
      %v737 = vshrl.u32 %v736, 7
      %v738 = vsub.s32 1, %v737
      %v739 = vrot.slane %v730, %v738
      %v742 = vmul.f32 %v562, %v735
      %v743 = vmul.f32 %v563, %v739
      %v744 = vmul.f32 %v564, %v735
      %v745 = vmul.f32 %v565, %v739
      %v746 = vadd.f32 %v725, %v742
      %v747 = vadd.f32 %v726, %v743
      %v748 = vadd.f32 %v727, %v744
      %v749 = vadd.f32 %v728, %v745
      %s750 = scalar_lea.vmem %s6, 22
      %v751 = vld [vmem:[%s750] ss:$8 sm:$0x3]
      %v753 = vlaneseq
      %v754 = vshrl.u32 %v753, 7
      %v755 = vsub.s32 0, %v754
      %v756 = vrot.slane %v751, %v755
      %v757 = vlaneseq
      %v758 = vshrl.u32 %v757, 7
      %v759 = vsub.s32 1, %v758
      %v760 = vrot.slane %v751, %v759
      %v763 = vmul.f32 %v590, %v756
      %v764 = vmul.f32 %v592, %v760
      %v765 = vmul.f32 %v591, %v756
      %v766 = vmul.f32 %v593, %v760
      %v767 = vadd.f32 %v746, %v763
      %v768 = vadd.f32 %v747, %v764
      %v769 = vadd.f32 %v748, %v765
      %v770 = vadd.f32 %v749, %v766
      %v771 = vrot.slane %v649, 7
      %v772 = vrot.slane %v650, 7
      %v773 = vrot.slane %v651, 7
      %v774 = vrot.slane %v652, 7
      %vm775 = vcmp.lt.s32.totalorder %v365, 1
      %v776 = vsel %vm775, %v771, %v773
      %v777 = vsel %vm775, %v772, %v774
      %v778 = vsel %vm775, %v773, %v771
      %v779 = vsel %vm775, %v774, %v772
      %v780 = vsel %vm367, 1, 0
      %v781 = vsel %vm368, 1, 0
      %vm782 = vcmp.eq.s32.totalorder %v780, 1
      %vm783 = vcmp.eq.s32.totalorder %v781, 1
      %v784 = vsel %vm782, %v778, 0.0
      %v785 = vsel %vm782, %v779, 0.0
      %v786 = vsel %vm783, %v776, 0.0
      %v787 = vsel %vm783, %v777, 0.0
      %v788 = vrot.slane %v767, 1
      %v789 = vrot.slane %v768, 1
      %v790 = vrot.slane %v769, 1
      %v791 = vrot.slane %v770, 1
      %vm792 = vcmp.lt.s32.totalorder %v365, 7
      %v793 = vsel %vm792, %v788, %v790
      %v794 = vsel %vm792, %v789, %v791
      %v795 = vsel %vm792, %v790, %v788
      %v796 = vsel %vm792, %v791, %v789
      %v797 = vsel %vm369, 1, 0
      %v798 = vsel %vm370, 1, 0
      %vm799 = vcmp.eq.s32.totalorder %v797, 1
      %vm800 = vcmp.eq.s32.totalorder %v798, 1
      %v801 = vsel %vm799, %v793, 0.0
      %v802 = vsel %vm799, %v794, 0.0
      %v803 = vsel %vm800, %v795, 0.0
      %v804 = vsel %vm800, %v796, 0.0
      %v805 = vadd.f32 %v708, %v784
      %v806 = vadd.f32 %v709, %v785
      %v807 = vadd.f32 %v710, %v786
      %v808 = vadd.f32 %v711, %v787
      %v809 = vadd.f32 %v805, %v801
      %v810 = vadd.f32 %v806, %v802
      %v811 = vadd.f32 %v807, %v803
      %v812 = vadd.f32 %v808, %v804
      %s813 = scalar_lea.vmem %s6, 2
      %v814 = vld [vmem:[%s813] ss:$8 sm:$0x3]
      %v816 = vlaneseq
      %v817 = vshrl.u32 %v816, 7
      %v818 = vsub.s32 0, %v817
      %v819 = vrot.slane %v814, %v818
      %v820 = vlaneseq
      %v821 = vshrl.u32 %v820, 7
      %v822 = vsub.s32 1, %v821
      %v823 = vrot.slane %v814, %v822
      %v826 = vmul.f32 %v809, %v819
      %v827 = vmul.f32 %v810, %v823
      %v828 = vmul.f32 %v811, %v819
      %v829 = vmul.f32 %v812, %v823
      %s830 = scalar_lea.vmem %s6, 3
      %v831 = vld [vmem:[%s830] ss:$8 sm:$0x3]
      %v833 = vlaneseq
      %v834 = vshrl.u32 %v833, 7
      %v835 = vsub.s32 0, %v834
      %v836 = vrot.slane %v831, %v835
      %v837 = vlaneseq
      %v838 = vshrl.u32 %v837, 7
      %v839 = vsub.s32 1, %v838
      %v840 = vrot.slane %v831, %v839
      %v843 = vadd.f32 %v826, %v836
      %v844 = vadd.f32 %v827, %v840
      %v845 = vadd.f32 %v828, %v836
      %v846 = vadd.f32 %v829, %v840
      %v847 = vadd.f32 %v843, %v845
      %v848 = vrot.slane %v847, 4
      %v849 = vadd.f32 %v847, %v848
      %v850 = vrot.slane %v849, 2
      %v851 = vadd.f32 %v849, %v850
      %v852 = vrot.slane %v851, 1
      %v853 = vadd.f32 %v851, %v852
      %v854 = vadd.f32 %v844, %v846
      %v855 = vrot.slane %v854, 4
      %v856 = vadd.f32 %v854, %v855
      %v857 = vrot.slane %v856, 2
      %v858 = vadd.f32 %v856, %v857
      %v859 = vrot.slane %v858, 1
      %v860 = vadd.f32 %v858, %v859
      %v861 = vld [vmem:[%s8] sm:$0xff]
      %v862 = vld [vmem:[%s8 + $0x8] sm:$0xff]
      %v863 = vld [vmem:[%s8 + $0x10] sm:$0xff]
      %v864 = vld [vmem:[%s8 + $0x18] sm:$0xff]
      %v865 = vld [vmem:[%s8 + $0x20] sm:$0xff]
      %v866 = vld [vmem:[%s8 + $0x28] sm:$0xff]
      %v867 = vld [vmem:[%s8 + $0x30] sm:$0xff]
      %v868 = vld [vmem:[%s8 + $0x38] sm:$0xff]
      %v869 = vld [vmem:[%s8 + $0x40] sm:$0xff]
      %v870 = vld [vmem:[%s8 + $0x48] sm:$0xff]
      %v871 = vld [vmem:[%s8 + $0x50] sm:$0xff]
      %v872 = vld [vmem:[%s8 + $0x58] sm:$0xff]
      %v873 = vld [vmem:[%s8 + $0x60] sm:$0xff]
      %v874 = vld [vmem:[%s8 + $0x68] sm:$0xff]
      %v875 = vld [vmem:[%s8 + $0x70] sm:$0xff]
      %v876 = vld [vmem:[%s8 + $0x78] sm:$0xff]
      %v877 = vld [vmem:[%s8 + $0x80] sm:$0xff]
      %v878 = vld [vmem:[%s8 + $0x88] sm:$0xff]
      %v879 = vld [vmem:[%s8 + $0x90] sm:$0xff]
      %v880 = vld [vmem:[%s8 + $0x98] sm:$0xff]
      %v881 = vld [vmem:[%s8 + $0xa0] sm:$0xff]
      %v882 = vld [vmem:[%s8 + $0xa8] sm:$0xff]
      %v883 = vld [vmem:[%s8 + $0xb0] sm:$0xff]
      %v884 = vld [vmem:[%s8 + $0xb8] sm:$0xff]
      %v885 = vld [vmem:[%s8 + $0xc0] sm:$0xff]
      %v886 = vld [vmem:[%s8 + $0xc8] sm:$0xff]
      %v887 = vld [vmem:[%s8 + $0xd0] sm:$0xff]
      %v888 = vld [vmem:[%s8 + $0xd8] sm:$0xff]
      %v889 = vld [vmem:[%s8 + $0xe0] sm:$0xff]
      %v890 = vld [vmem:[%s8 + $0xe8] sm:$0xff]
      %v891 = vld [vmem:[%s8 + $0xf0] sm:$0xff]
      %v892 = vld [vmem:[%s8 + $0xf8] sm:$0xff]
      %s893 = scalar_lea.vmem %s9, 32
      %v894 = vld [vmem:[%s893] ss:$8 sm:$0x3]
      %895 = vmatprep.subr.mxu0 0.0
      %896 = vmatpush1.msra.mxu0 %v861
      %897 = vmatprep.subr.mxu0 0.0
      %898 = vmatpush1.msra.mxu0 %v862
      %899 = vmatprep.subr.mxu0 0.0
      %900 = vmatpush1.msra.mxu0 %v863
      %901 = vmatprep.subr.mxu0 0.0
      %902 = vmatpush1.msra.mxu0 %v864
      %903 = vmatprep.subr.mxu0 0.0
      %904 = vmatpush1.msra.mxu0 %v865
      %905 = vmatprep.subr.mxu0 0.0
      %906 = vmatpush1.msra.mxu0 %v866
      %907 = vmatprep.subr.mxu0 0.0
      %908 = vmatpush1.msra.mxu0 %v867
      %909 = vmatprep.subr.mxu0 0.0
      %910 = vmatpush1.msra.mxu0 %v868
      %911 = vmatprep.subr.mxu0 0.0
      %912 = vmatpush1.msra.mxu0 %v869
      %913 = vmatprep.subr.mxu0 0.0
      %914 = vmatpush1.msra.mxu0 %v870
      %915 = vmatprep.subr.mxu0 0.0
      %916 = vmatpush1.msra.mxu0 %v871
      %917 = vmatprep.subr.mxu0 0.0
      %918 = vmatpush1.msra.mxu0 %v872
      %919 = vmatprep.subr.mxu0 0.0
      %920 = vmatpush1.msra.mxu0 %v873
      %921 = vmatprep.subr.mxu0 0.0
      %922 = vmatpush1.msra.mxu0 %v874
      %923 = vmatprep.subr.mxu0 0.0
      %924 = vmatpush1.msra.mxu0 %v875
      %925 = vmatprep.subr.mxu0 0.0
      %926 = vmatpush1.msra.mxu0 %v876
      %927 = vmatprep.subr.mxu0 0.0
      %928 = vmatpush1.msra.mxu0 %v877
      %929 = vmatprep.subr.mxu0 0.0
      %930 = vmatpush1.msra.mxu0 %v878
      %931 = vmatprep.subr.mxu0 0.0
      %932 = vmatpush1.msra.mxu0 %v879
      %933 = vmatprep.subr.mxu0 0.0
      %934 = vmatpush1.msra.mxu0 %v880
      %935 = vmatprep.subr.mxu0 0.0
      %936 = vmatpush1.msra.mxu0 %v881
      %937 = vmatprep.subr.mxu0 0.0
      %938 = vmatpush1.msra.mxu0 %v882
      %939 = vmatprep.subr.mxu0 0.0
      %940 = vmatpush1.msra.mxu0 %v883
      %941 = vmatprep.subr.mxu0 0.0
      %942 = vmatpush1.msra.mxu0 %v884
      %943 = vmatprep.subr.mxu0 0.0
      %944 = vmatpush1.msra.mxu0 %v885
      %945 = vmatprep.subr.mxu0 0.0
      %946 = vmatpush1.msra.mxu0 %v886
      %947 = vmatprep.subr.mxu0 0.0
      %948 = vmatpush1.msra.mxu0 %v887
      %949 = vmatprep.subr.mxu0 0.0
      %950 = vmatpush1.msra.mxu0 %v888
      %951 = vmatprep.subr.mxu0 0.0
      %952 = vmatpush1.msra.mxu0 %v889
      %953 = vmatprep.subr.mxu0 0.0
      %954 = vmatpush1.msra.mxu0 %v890
      %955 = vmatprep.subr.mxu0 0.0
      %956 = vmatpush1.msra.mxu0 %v891
      %957 = vmatprep.subr.mxu0 0.0
      %958 = vmatpush1.msra.mxu0 %v892
      %959 = vmatprep.mubr.f32.mxu0 %v860
      %960 = vmatmul.mubr.f32.gmra.mrb[0].mxu0 %v853
      %v961 = vpop.f32.mrb[0].mxu0
      %v962 = vadd.f32 %v894, %v961
      %v963 = vpop.f32.mrb[0].mxu0
      %964 = vdwg.mxu0
      %v965 = vmax.f32 %v962, 0.0
      %v966 = vld [vmem:[%s9] sm:$0xff]
      %v967 = vld [vmem:[%s9 + $0x8] sm:$0xff]
      %s968 = scalar_lea.vmem %s6, 4
      %v969 = vld [vmem:[%s968] ss:$8 sm:$0x3]
      %v971 = vlaneseq
      %v972 = vshrl.u32 %v971, 7
      %v973 = vsub.s32 0, %v972
      %v974 = vrot.slane %v969, %v973
      %v975 = vlaneseq
      %v976 = vshrl.u32 %v975, 7
      %v977 = vsub.s32 1, %v976
      %v978 = vrot.slane %v969, %v977
      %vm981 = vcmask 64512
      %v983 = vsel %vm981, %v965, 0
      %985 = vmatprep.subr.mxu0 %v967
      %986 = vmatpush1.msra.mxu0 %v966
      %987 = vmatprep.subr.mxu0 0.0
      %988 = vmatpush1.msra.mxu0 0.0
      %989 = vmatprep.subr.mxu0 0.0
      %990 = vmatpush1.msra.mxu0 0.0
      %991 = vmatprep.subr.mxu0 0.0
      %992 = vmatpush1.msra.mxu0 0.0
      %993 = vmatprep.subr.mxu0 0.0
      %994 = vmatpush1.msra.mxu0 0.0
      %995 = vmatprep.subr.mxu0 0.0
      %996 = vmatpush1.msra.mxu0 0.0
      %997 = vmatprep.subr.mxu0 0.0
      %998 = vmatpush1.msra.mxu0 0.0
      %999 = vmatprep.subr.mxu0 0.0
      %1000 = vmatpush1.msra.mxu0 0.0
      %1001 = vmatprep.subr.mxu0 0.0
      %1002 = vmatpush1.msra.mxu0 0.0
      %1003 = vmatprep.subr.mxu0 0.0
      %1004 = vmatpush1.msra.mxu0 0.0
      %1005 = vmatprep.subr.mxu0 0.0
      %1006 = vmatpush1.msra.mxu0 0.0
      %1007 = vmatprep.subr.mxu0 0.0
      %1008 = vmatpush1.msra.mxu0 0.0
      %1009 = vmatprep.subr.mxu0 0.0
      %1010 = vmatpush1.msra.mxu0 0.0
      %1011 = vmatprep.subr.mxu0 0.0
      %1012 = vmatpush1.msra.mxu0 0.0
      %1013 = vmatprep.subr.mxu0 0.0
      %1014 = vmatpush1.msra.mxu0 0.0
      %1015 = vmatprep.subr.mxu0 0.0
      %1016 = vmatpush1.msra.mxu0 0.0
      %1017 = vmatprep.subr.mxu0 0.0
      %1018 = vmatpush1.msra.mxu0 0.0
      %1019 = vmatprep.subr.mxu0 0.0
      %1020 = vmatpush1.msra.mxu0 0.0
      %1021 = vmatprep.subr.mxu0 0.0
      %1022 = vmatpush1.msra.mxu0 0.0
      %1023 = vmatprep.subr.mxu0 0.0
      %1024 = vmatpush1.msra.mxu0 0.0
      %1025 = vmatprep.subr.mxu0 0.0
      %1026 = vmatpush1.msra.mxu0 0.0
      %1027 = vmatprep.subr.mxu0 0.0
      %1028 = vmatpush1.msra.mxu0 0.0
      %1029 = vmatprep.subr.mxu0 0.0
      %1030 = vmatpush1.msra.mxu0 0.0
      %1031 = vmatprep.subr.mxu0 0.0
      %1032 = vmatpush1.msra.mxu0 0.0
      %1033 = vmatprep.subr.mxu0 0.0
      %1034 = vmatpush1.msra.mxu0 0.0
      %1035 = vmatprep.subr.mxu0 0.0
      %1036 = vmatpush1.msra.mxu0 0.0
      %1037 = vmatprep.subr.mxu0 0.0
      %1038 = vmatpush1.msra.mxu0 0.0
      %1039 = vmatprep.subr.mxu0 0.0
      %1040 = vmatpush1.msra.mxu0 0.0
      %1041 = vmatprep.subr.mxu0 0.0
      %1042 = vmatpush1.msra.mxu0 0.0
      %1043 = vmatprep.subr.mxu0 0.0
      %1044 = vmatpush1.msra.mxu0 0.0
      %1045 = vmatprep.subr.mxu0 0.0
      %1046 = vmatpush1.msra.mxu0 0.0
      %1047 = vmatprep.subr.mxu0 0.0
      %1048 = vmatpush1.msra.mxu0 0.0
      %1049 = vmatprep.mubr.f32.mxu0 0.0
      %1050 = vmatmul.mubr.f32.gmra.mrb[0].mxu0 %v983
      %v1051 = vpop.f32.mrb[0].mxu0
      %v1052 = vadd.f32 %v974, %v1051
      %v1053 = vpop.f32.mrb[0].mxu0
      %v1054 = vadd.f32 %v978, %v1053
      %1055 = vdwg.mxu0
      %v1056 = vadd.f32 %v1052, 3.0
      %v1057 = vadd.f32 %v1054, 3.0
      %v1058 = vmax.f32 %v1056, 0.0
      %v1059 = vmax.f32 %v1057, 0.0
      %v1060 = vmin.f32 %v1058, 6.0
      %v1061 = vmin.f32 %v1059, 6.0
      %v1062 = vmul.f32 %v1060, 0.16666667
      %v1063 = vmul.f32 %v1061, 0.16666667
      %v1064 = vlaneseq
      %v1065 = vshrl.u32 %v1064, 7
      %v1066 = vsub.s32 0, %v1065
      %v1067 = vrot.slane %v1062, %v1066
      %v1068 = vlaneseq
      %v1069 = vshrl.u32 %v1068, 7
      %v1070 = vsub.s32 0, %v1069
      %v1071 = vrot.slane %v1063, %v1070
      %v1072 = vmul.f32 %v843, %v1067
      %v1073 = vmul.f32 %v844, %v1071
      %v1074 = vmul.f32 %v845, %v1067
      %v1075 = vmul.f32 %v846, %v1071
      %v1076 = vadd.f32 %v1072, 3.0
      %v1077 = vadd.f32 %v1073, 3.0
      %v1078 = vadd.f32 %v1074, 3.0
      %v1079 = vadd.f32 %v1075, 3.0
      %v1080 = vmax.f32 %v1076, 0.0
      %v1081 = vmax.f32 %v1077, 0.0
      %v1082 = vmax.f32 %v1078, 0.0
      %v1083 = vmax.f32 %v1079, 0.0
      %v1084 = vmin.f32 %v1080, 6.0
      %v1085 = vmin.f32 %v1081, 6.0
      %v1086 = vmin.f32 %v1082, 6.0
      %v1087 = vmin.f32 %v1083, 6.0
      %v1088 = vmul.f32 %v1084, 0.16666667
      %v1089 = vmul.f32 %v1085, 0.16666667
      %v1090 = vmul.f32 %v1086, 0.16666667
      %v1091 = vmul.f32 %v1087, 0.16666667
      %v1092 = vmul.f32 %v1072, %v1088
      %v1093 = vmul.f32 %v1073, %v1089
      %v1094 = vmul.f32 %v1074, %v1090
      %v1095 = vmul.f32 %v1075, %v1091
      %v1096 = vpack.c.bf16 %v1094, %v1092
      %v1097 = vpack.c.bf16 %v1095, %v1093
      %v1098 = vld [vmem:[%s3] sm:$0xf]
      %v1099 = vld [vmem:[%s3 + $0x4] sm:$0xf]
      %v1100 = vld [vmem:[%s3 + $0x8] sm:$0xf]
      %v1101 = vld [vmem:[%s3 + $0xc] sm:$0xf]
      %v1102 = vld [vmem:[%s3 + $0x10] sm:$0xf]
      %v1103 = vld [vmem:[%s3 + $0x14] sm:$0xf]
      %v1104 = vld [vmem:[%s3 + $0x18] sm:$0xf]
      %v1105 = vld [vmem:[%s3 + $0x1c] sm:$0xf]
      %v1106 = vld [vmem:[%s3 + $0x20] sm:$0xf]
      %v1107 = vld [vmem:[%s3 + $0x24] sm:$0xf]
      %v1108 = vld [vmem:[%s3 + $0x28] sm:$0xf]
      %v1109 = vld [vmem:[%s3 + $0x2c] sm:$0xf]
      %v1110 = vld [vmem:[%s3 + $0x30] sm:$0xf]
      %v1111 = vld [vmem:[%s3 + $0x34] sm:$0xf]
      %v1112 = vld [vmem:[%s3 + $0x38] sm:$0xf]
      %v1113 = vld [vmem:[%s3 + $0x3c] sm:$0xf]
      %v1114 = vld [vmem:[%s3 + $0x40] sm:$0xf]
      %v1115 = vld [vmem:[%s3 + $0x44] sm:$0xf]
      %v1116 = vld [vmem:[%s3 + $0x48] sm:$0xf]
      %v1117 = vld [vmem:[%s3 + $0x4c] sm:$0xf]
      %v1118 = vld [vmem:[%s3 + $0x50] sm:$0xf]
      %v1119 = vld [vmem:[%s3 + $0x54] sm:$0xf]
      %v1120 = vld [vmem:[%s3 + $0x58] sm:$0xf]
      %v1121 = vld [vmem:[%s3 + $0x5c] sm:$0xf]
      %v1122 = vld [vmem:[%s3 + $0x60] sm:$0xf]
      %v1123 = vld [vmem:[%s3 + $0x64] sm:$0xf]
      %v1124 = vld [vmem:[%s3 + $0x68] sm:$0xf]
      %v1125 = vld [vmem:[%s3 + $0x6c] sm:$0xf]
      %v1126 = vld [vmem:[%s3 + $0x70] sm:$0xf]
      %v1127 = vld [vmem:[%s3 + $0x74] sm:$0xf]
      %v1128 = vld [vmem:[%s3 + $0x78] sm:$0xf]
      %v1129 = vld [vmem:[%s3 + $0x7c] sm:$0xf]
      %v1162 = vunpack.c.l.b16 %v1098
      %v1163 = vunpack.c.l.b16 %v1099
      %v1164 = vunpack.c.l.b16 %v1100
      %v1165 = vunpack.c.l.b16 %v1101
      %v1166 = vunpack.c.l.b16 %v1102
      %v1167 = vunpack.c.l.b16 %v1103
      %v1168 = vunpack.c.l.b16 %v1104
      %v1169 = vunpack.c.l.b16 %v1105
      %v1170 = vunpack.c.l.b16 %v1106
      %v1171 = vunpack.c.l.b16 %v1107
      %v1172 = vunpack.c.l.b16 %v1108
      %v1173 = vunpack.c.l.b16 %v1109
      %v1174 = vunpack.c.l.b16 %v1110
      %v1175 = vunpack.c.l.b16 %v1111
      %v1176 = vunpack.c.l.b16 %v1112
      %v1177 = vunpack.c.l.b16 %v1113
      %v1178 = vunpack.c.l.b16 %v1114
      %v1179 = vunpack.c.l.b16 %v1115
      %v1180 = vunpack.c.l.b16 %v1116
      %v1181 = vunpack.c.l.b16 %v1117
      %v1182 = vunpack.c.l.b16 %v1118
      %v1183 = vunpack.c.l.b16 %v1119
      %v1184 = vunpack.c.l.b16 %v1120
      %v1185 = vunpack.c.l.b16 %v1121
      %v1186 = vunpack.c.l.b16 %v1122
      %v1187 = vunpack.c.l.b16 %v1123
      %v1188 = vunpack.c.l.b16 %v1124
      %v1189 = vunpack.c.l.b16 %v1125
      %v1190 = vunpack.c.l.b16 %v1126
      %v1191 = vunpack.c.l.b16 %v1127
      %v1192 = vunpack.c.l.b16 %v1128
      %v1193 = vunpack.c.l.b16 %v1129
      %v1194 = vpack.c.b16 %v1163, %v1162
      %v1195 = vpack.c.b16 %v1165, %v1164
      %v1196 = vpack.c.b16 %v1167, %v1166
      %v1197 = vpack.c.b16 %v1169, %v1168
      %v1198 = vpack.c.b16 %v1171, %v1170
      %v1199 = vpack.c.b16 %v1173, %v1172
      %v1200 = vpack.c.b16 %v1175, %v1174
      %v1201 = vpack.c.b16 %v1177, %v1176
      %v1202 = vpack.c.b16 %v1179, %v1178
      %v1203 = vpack.c.b16 %v1181, %v1180
      %v1204 = vpack.c.b16 %v1183, %v1182
      %v1205 = vpack.c.b16 %v1185, %v1184
      %v1206 = vpack.c.b16 %v1187, %v1186
      %v1207 = vpack.c.b16 %v1189, %v1188
      %v1208 = vpack.c.b16 %v1191, %v1190
      %v1209 = vpack.c.b16 %v1193, %v1192
      %1226 = vmatprep.subr.bf16.mxu0 0
      %1227 = vmatpush1.bf16.msra.mxu0 %v1194
      %1228 = vmatprep.subr.bf16.mxu0 0
      %1229 = vmatpush1.bf16.msra.mxu0 %v1195
      %1230 = vmatprep.subr.bf16.mxu0 0
      %1231 = vmatpush1.bf16.msra.mxu0 %v1196
      %1232 = vmatprep.subr.bf16.mxu0 0
      %1233 = vmatpush1.bf16.msra.mxu0 %v1197
      %1234 = vmatprep.subr.bf16.mxu0 0
      %1235 = vmatpush1.bf16.msra.mxu0 %v1198
      %1236 = vmatprep.subr.bf16.mxu0 0
      %1237 = vmatpush1.bf16.msra.mxu0 %v1199
      %1238 = vmatprep.subr.bf16.mxu0 0
      %1239 = vmatpush1.bf16.msra.mxu0 %v1200
      %1240 = vmatprep.subr.bf16.mxu0 0
      %1241 = vmatpush1.bf16.msra.mxu0 %v1201
      %1242 = vmatprep.subr.bf16.mxu0 0
      %1243 = vmatpush1.bf16.msra.mxu0 %v1202
      %1244 = vmatprep.subr.bf16.mxu0 0
      %1245 = vmatpush1.bf16.msra.mxu0 %v1203
      %1246 = vmatprep.subr.bf16.mxu0 0
      %1247 = vmatpush1.bf16.msra.mxu0 %v1204
      %1248 = vmatprep.subr.bf16.mxu0 0
      %1249 = vmatpush1.bf16.msra.mxu0 %v1205
      %1250 = vmatprep.subr.bf16.mxu0 0
      %1251 = vmatpush1.bf16.msra.mxu0 %v1206
      %1252 = vmatprep.subr.bf16.mxu0 0
      %1253 = vmatpush1.bf16.msra.mxu0 %v1207
      %1254 = vmatprep.subr.bf16.mxu0 0
      %1255 = vmatpush1.bf16.msra.mxu0 %v1208
      %1256 = vmatprep.subr.bf16.mxu0 0
      %1257 = vmatpush1.bf16.msra.mxu0 %v1209
      %1258 = vmatprep.mubr.bf16.mxu0 %v1097
      %1259 = vmatmul.mubr.bf16.gmra.mrb[0].mxu0 %v1096
      %v1260 = vpop.f32.mrb[0].mxu0
      %v1261 = vadd.f32 0.0, %v1260
      %v1262 = vpop.f32.mrb[0].mxu0
      %v1263 = vpop.f32.mrb[0].mxu0
      %v1264 = vadd.f32 0.0, %v1263
      %v1265 = vpop.f32.mrb[0].mxu0
      %1266 = vdwg.mxu0
      %v1267 = vld [vmem:[%s7] sm:$0x1]
      %v1268 = vlaneseq
      %v1269 = vshrl.u32 %v1268, 7
      %v1270 = vsub.s32 0, %v1269
      %v1271 = vrot.slane %v1267, %v1270
      %v1272 = vmul.f32 %v1261, %v1271
      %v1273 = vmul.f32 %v1264, %v1271
      %v1274 = vld [vmem:[%s7 + $0x1] sm:$0x1]
      %v1275 = vlaneseq
      %v1276 = vshrl.u32 %v1275, 7
      %v1277 = vsub.s32 0, %v1276
      %v1278 = vrot.slane %v1274, %v1277
      %v1279 = vadd.f32 %v1272, %v1278
      %v1280 = vadd.f32 %v1273, %v1278
      %v1281 = vadd.f32 %v371, %v1279
      %v1282 = vadd.f32 %v372, %v1280
      %1283 = vst [vmem:[%s361] sm:$0xff] %v1281
      %1284 = vst [vmem:[%s361 + $0x8] sm:$0xff] %v1282
      %v1285 = vld [vmem:[%s1] sm:$0x3]
      %v1286 = vstv %s21
      %vm1287 = vcmp.eq.s32.totalorder %v365, %v1286
      %v1288 = vsel %vm1287, %v1285, 0.0
      %vm1289 = vcmask 58368
      %v1290 = vsel %vm1289, %v1288, 0.0
      %v1291 = vrot.slane %v1290, 4
      %v1292 = vadd.f32 %v1290, %v1291
      %v1293 = vrot.slane %v1292, 2
      %v1294 = vadd.f32 %v1292, %v1293
      %v1295 = vrot.slane %v1294, 1
      %v1296 = vadd.f32 %v1294, %v1295
      %v1297 = vxor.u32 %v1296, 2147483648
      %v1298 = vmul.f32 %v1297, 1.442695
      %v1299 = vpow.pop %v1298
      %v1300 = vadd.f32 %v1299, 1.0
      %v1301 = vrcp.pop %v1300
      %v1302 = vmul.f32 1.0, %v1301
      %v1303 = vmul.f32 %v1296, %v1302
      %v1304 = vld [vmem:[%s9 + $0x10] sm:$0xff]
      %v1305 = vld [vmem:[%s9 + $0x18] sm:$0xff]
      %s1306 = scalar_lea.vmem %s6, 5
      %v1307 = vld [vmem:[%s1306] ss:$8 sm:$0x3]
      %v1309 = vlaneseq
      %v1310 = vshrl.u32 %v1309, 7
      %v1311 = vsub.s32 0, %v1310
      %v1312 = vrot.slane %v1307, %v1311
      %v1313 = vlaneseq
      %v1314 = vshrl.u32 %v1313, 7
      %v1315 = vsub.s32 1, %v1314
      %v1316 = vrot.slane %v1307, %v1315
      %v1320 = vsel %vm981, %v1303, 0
      %1322 = vmatprep.subr.mxu0 %v1305
      %1323 = vmatpush1.msra.mxu0 %v1304
      %1324 = vmatprep.subr.mxu0 0.0
      %1325 = vmatpush1.msra.mxu0 0.0
      %1326 = vmatprep.subr.mxu0 0.0
      %1327 = vmatpush1.msra.mxu0 0.0
      %1328 = vmatprep.subr.mxu0 0.0
      %1329 = vmatpush1.msra.mxu0 0.0
      %1330 = vmatprep.subr.mxu0 0.0
      %1331 = vmatpush1.msra.mxu0 0.0
      %1332 = vmatprep.subr.mxu0 0.0
      %1333 = vmatpush1.msra.mxu0 0.0
      %1334 = vmatprep.subr.mxu0 0.0
      %1335 = vmatpush1.msra.mxu0 0.0
      %1336 = vmatprep.subr.mxu0 0.0
      %1337 = vmatpush1.msra.mxu0 0.0
      %1338 = vmatprep.subr.mxu0 0.0
      %1339 = vmatpush1.msra.mxu0 0.0
      %1340 = vmatprep.subr.mxu0 0.0
      %1341 = vmatpush1.msra.mxu0 0.0
      %1342 = vmatprep.subr.mxu0 0.0
      %1343 = vmatpush1.msra.mxu0 0.0
      %1344 = vmatprep.subr.mxu0 0.0
      %1345 = vmatpush1.msra.mxu0 0.0
      %1346 = vmatprep.subr.mxu0 0.0
      %1347 = vmatpush1.msra.mxu0 0.0
      %1348 = vmatprep.subr.mxu0 0.0
      %1349 = vmatpush1.msra.mxu0 0.0
      %1350 = vmatprep.subr.mxu0 0.0
      %1351 = vmatpush1.msra.mxu0 0.0
      %1352 = vmatprep.subr.mxu0 0.0
      %1353 = vmatpush1.msra.mxu0 0.0
      %1354 = vmatprep.subr.mxu0 0.0
      %1355 = vmatpush1.msra.mxu0 0.0
      %1356 = vmatprep.subr.mxu0 0.0
      %1357 = vmatpush1.msra.mxu0 0.0
      %1358 = vmatprep.subr.mxu0 0.0
      %1359 = vmatpush1.msra.mxu0 0.0
      %1360 = vmatprep.subr.mxu0 0.0
      %1361 = vmatpush1.msra.mxu0 0.0
      %1362 = vmatprep.subr.mxu0 0.0
      %1363 = vmatpush1.msra.mxu0 0.0
      %1364 = vmatprep.subr.mxu0 0.0
      %1365 = vmatpush1.msra.mxu0 0.0
      %1366 = vmatprep.subr.mxu0 0.0
      %1367 = vmatpush1.msra.mxu0 0.0
      %1368 = vmatprep.subr.mxu0 0.0
      %1369 = vmatpush1.msra.mxu0 0.0
      %1370 = vmatprep.subr.mxu0 0.0
      %1371 = vmatpush1.msra.mxu0 0.0
      %1372 = vmatprep.subr.mxu0 0.0
      %1373 = vmatpush1.msra.mxu0 0.0
      %1374 = vmatprep.subr.mxu0 0.0
      %1375 = vmatpush1.msra.mxu0 0.0
      %1376 = vmatprep.subr.mxu0 0.0
      %1377 = vmatpush1.msra.mxu0 0.0
      %1378 = vmatprep.subr.mxu0 0.0
      %1379 = vmatpush1.msra.mxu0 0.0
      %1380 = vmatprep.subr.mxu0 0.0
      %1381 = vmatpush1.msra.mxu0 0.0
      %1382 = vmatprep.subr.mxu0 0.0
      %1383 = vmatpush1.msra.mxu0 0.0
      %1384 = vmatprep.subr.mxu0 0.0
      %1385 = vmatpush1.msra.mxu0 0.0
      %1386 = vmatprep.mubr.f32.mxu0 0.0
      %1387 = vmatmul.mubr.f32.gmra.mrb[0].mxu0 %v1320
      %v1388 = vpop.f32.mrb[0].mxu0
      %v1389 = vadd.f32 %v1312, %v1388
      %v1390 = vpop.f32.mrb[0].mxu0
      %v1391 = vadd.f32 %v1316, %v1390
      %1392 = vdwg.mxu0
      %v1393 = vpack.c.bf16 %v1282, %v1281
      %v1394 = vld [vmem:[%s4] sm:$0xff]
      %v1395 = vld [vmem:[%s4 + $0x8] sm:$0xf]
      %v1396 = vld [vmem:[%s4 + $0xc] sm:$0xff]
      %v1397 = vld [vmem:[%s4 + $0x14] sm:$0xf]
      %v1398 = vld [vmem:[%s4 + $0x18] sm:$0xff]
      %v1399 = vld [vmem:[%s4 + $0x20] sm:$0xf]
      %v1400 = vld [vmem:[%s4 + $0x24] sm:$0xff]
      %v1401 = vld [vmem:[%s4 + $0x2c] sm:$0xf]
      %v1402 = vld [vmem:[%s4 + $0x30] sm:$0xff]
      %v1403 = vld [vmem:[%s4 + $0x38] sm:$0xf]
      %v1404 = vld [vmem:[%s4 + $0x3c] sm:$0xff]
      %v1405 = vld [vmem:[%s4 + $0x44] sm:$0xf]
      %v1406 = vld [vmem:[%s4 + $0x48] sm:$0xff]
      %v1407 = vld [vmem:[%s4 + $0x50] sm:$0xf]
      %v1408 = vld [vmem:[%s4 + $0x54] sm:$0xff]
      %v1409 = vld [vmem:[%s4 + $0x5c] sm:$0xf]
      %v1410 = vld [vmem:[%s4 + $0x60] sm:$0xff]
      %v1411 = vld [vmem:[%s4 + $0x68] sm:$0xf]
      %v1412 = vld [vmem:[%s4 + $0x6c] sm:$0xff]
      %v1413 = vld [vmem:[%s4 + $0x74] sm:$0xf]
      %v1414 = vld [vmem:[%s4 + $0x78] sm:$0xff]
      %v1415 = vld [vmem:[%s4 + $0x80] sm:$0xf]
      %v1416 = vld [vmem:[%s4 + $0x84] sm:$0xff]
      %v1417 = vld [vmem:[%s4 + $0x8c] sm:$0xf]
      %v1418 = vld [vmem:[%s4 + $0x90] sm:$0xff]
      %v1419 = vld [vmem:[%s4 + $0x98] sm:$0xf]
      %v1420 = vld [vmem:[%s4 + $0x9c] sm:$0xff]
      %v1421 = vld [vmem:[%s4 + $0xa4] sm:$0xf]
      %v1422 = vld [vmem:[%s4 + $0xa8] sm:$0xff]
      %v1423 = vld [vmem:[%s4 + $0xb0] sm:$0xf]
      %v1424 = vld [vmem:[%s4 + $0xb4] sm:$0xff]
      %v1425 = vld [vmem:[%s4 + $0xbc] sm:$0xf]
      %v1458 = vunpack.c.l.b16 %v1394
      %v1459 = vunpack.c.h.b16 %v1394
      %v1460 = vunpack.c.l.b16 %v1395
      %v1461 = vunpack.c.l.b16 %v1396
      %v1462 = vunpack.c.h.b16 %v1396
      %v1463 = vunpack.c.l.b16 %v1397
      %v1464 = vunpack.c.l.b16 %v1398
      %v1465 = vunpack.c.h.b16 %v1398
      %v1466 = vunpack.c.l.b16 %v1399
      %v1467 = vunpack.c.l.b16 %v1400
      %v1468 = vunpack.c.h.b16 %v1400
      %v1469 = vunpack.c.l.b16 %v1401
      %v1470 = vunpack.c.l.b16 %v1402
      %v1471 = vunpack.c.h.b16 %v1402
      %v1472 = vunpack.c.l.b16 %v1403
      %v1473 = vunpack.c.l.b16 %v1404
      %v1474 = vunpack.c.h.b16 %v1404
      %v1475 = vunpack.c.l.b16 %v1405
      %v1476 = vunpack.c.l.b16 %v1406
      %v1477 = vunpack.c.h.b16 %v1406
      %v1478 = vunpack.c.l.b16 %v1407
      %v1479 = vunpack.c.l.b16 %v1408
      %v1480 = vunpack.c.h.b16 %v1408
      %v1481 = vunpack.c.l.b16 %v1409
      %v1482 = vunpack.c.l.b16 %v1410
      %v1483 = vunpack.c.h.b16 %v1410
      %v1484 = vunpack.c.l.b16 %v1411
      %v1485 = vunpack.c.l.b16 %v1412
      %v1486 = vunpack.c.h.b16 %v1412
      %v1487 = vunpack.c.l.b16 %v1413
      %v1488 = vunpack.c.l.b16 %v1414
      %v1489 = vunpack.c.h.b16 %v1414
      %v1490 = vunpack.c.l.b16 %v1415
      %v1491 = vunpack.c.l.b16 %v1416
      %v1492 = vunpack.c.h.b16 %v1416
      %v1493 = vunpack.c.l.b16 %v1417
      %v1494 = vunpack.c.l.b16 %v1418
      %v1495 = vunpack.c.h.b16 %v1418
      %v1496 = vunpack.c.l.b16 %v1419
      %v1497 = vunpack.c.l.b16 %v1420
      %v1498 = vunpack.c.h.b16 %v1420
      %v1499 = vunpack.c.l.b16 %v1421
      %v1500 = vunpack.c.l.b16 %v1422
      %v1501 = vunpack.c.h.b16 %v1422
      %v1502 = vunpack.c.l.b16 %v1423
      %v1503 = vunpack.c.l.b16 %v1424
      %v1504 = vunpack.c.h.b16 %v1424
      %v1505 = vunpack.c.l.b16 %v1425
      %v1506 = vpack.c.b16 %v1461, %v1458
      %v1507 = vpack.c.b16 %v1462, %v1459
      %v1508 = vpack.c.b16 %v1463, %v1460
      %v1509 = vpack.c.b16 %v1467, %v1464
      %v1510 = vpack.c.b16 %v1468, %v1465
      %v1511 = vpack.c.b16 %v1469, %v1466
      %v1512 = vpack.c.b16 %v1473, %v1470
      %v1513 = vpack.c.b16 %v1474, %v1471
      %v1514 = vpack.c.b16 %v1475, %v1472
      %v1515 = vpack.c.b16 %v1479, %v1476
      %v1516 = vpack.c.b16 %v1480, %v1477
      %v1517 = vpack.c.b16 %v1481, %v1478
      %v1518 = vpack.c.b16 %v1485, %v1482
      %v1519 = vpack.c.b16 %v1486, %v1483
      %v1520 = vpack.c.b16 %v1487, %v1484
      %v1521 = vpack.c.b16 %v1491, %v1488
      %v1522 = vpack.c.b16 %v1492, %v1489
      %v1523 = vpack.c.b16 %v1493, %v1490
      %v1524 = vpack.c.b16 %v1497, %v1494
      %v1525 = vpack.c.b16 %v1498, %v1495
      %v1526 = vpack.c.b16 %v1499, %v1496
      %v1527 = vpack.c.b16 %v1503, %v1500
      %v1528 = vpack.c.b16 %v1504, %v1501
      %v1529 = vpack.c.b16 %v1505, %v1502
      %1554 = vmatprep.subr.bf16.mxu0 %v1507
      %1555 = vmatpush1.bf16.msra.mxu0 %v1506
      %1556 = vmatprep.subr.bf16.mxu0 %v1510
      %1557 = vmatpush1.bf16.msra.mxu0 %v1509
      %1558 = vmatprep.subr.bf16.mxu0 %v1513
      %1559 = vmatpush1.bf16.msra.mxu0 %v1512
      %1560 = vmatprep.subr.bf16.mxu0 %v1516
      %1561 = vmatpush1.bf16.msra.mxu0 %v1515
      %1562 = vmatprep.subr.bf16.mxu0 %v1519
      %1563 = vmatpush1.bf16.msra.mxu0 %v1518
      %1564 = vmatprep.subr.bf16.mxu0 %v1522
      %1565 = vmatpush1.bf16.msra.mxu0 %v1521
      %1566 = vmatprep.subr.bf16.mxu0 %v1525
      %1567 = vmatpush1.bf16.msra.mxu0 %v1524
      %1568 = vmatprep.subr.bf16.mxu0 %v1528
      %1569 = vmatpush1.bf16.msra.mxu0 %v1527
      %1570 = vmatprep.subr.bf16.mxu0 0
      %1571 = vmatpush1.bf16.msra.mxu0 0
      %1572 = vmatprep.subr.bf16.mxu0 0
      %1573 = vmatpush1.bf16.msra.mxu0 0
      %1574 = vmatprep.subr.bf16.mxu0 0
      %1575 = vmatpush1.bf16.msra.mxu0 0
      %1576 = vmatprep.subr.bf16.mxu0 0
      %1577 = vmatpush1.bf16.msra.mxu0 0
      %1578 = vmatprep.subr.bf16.mxu0 0
      %1579 = vmatpush1.bf16.msra.mxu0 0
      %1580 = vmatprep.subr.bf16.mxu0 0
      %1581 = vmatpush1.bf16.msra.mxu0 0
      %1582 = vmatprep.subr.bf16.mxu0 0
      %1583 = vmatpush1.bf16.msra.mxu0 0
      %1584 = vmatprep.subr.bf16.mxu0 0
      %1585 = vmatpush1.bf16.msra.mxu0 0
      %1586 = vmatprep.mubr.bf16.mxu0 0
      %1587 = vmatmul.mubr.bf16.gmra.mrb[0].mxu0 %v1393
      %v1588 = vpop.f32.mrb[0].mxu0
      %v1589 = vadd.f32 0.0, %v1588
      %v1590 = vpop.f32.mrb[0].mxu0
      %v1591 = vadd.f32 0.0, %v1590
      %v1592 = vpop.f32.mrb[0].mxu0
      %v1593 = vadd.f32 0.0, %v1592
      %v1594 = vpop.f32.mrb[0].mxu0
      %v1595 = vadd.f32 0.0, %v1594
      %1596 = vdwg.mxu0
      %1597 = vmatprep.subr.bf16.mxu0 0
      %1598 = vmatpush1.bf16.msra.mxu0 %v1508
      %1599 = vmatprep.subr.bf16.mxu0 0
      %1600 = vmatpush1.bf16.msra.mxu0 %v1511
      %1601 = vmatprep.subr.bf16.mxu0 0
      %1602 = vmatpush1.bf16.msra.mxu0 %v1514
      %1603 = vmatprep.subr.bf16.mxu0 0
      %1604 = vmatpush1.bf16.msra.mxu0 %v1517
      %1605 = vmatprep.subr.bf16.mxu0 0
      %1606 = vmatpush1.bf16.msra.mxu0 %v1520
      %1607 = vmatprep.subr.bf16.mxu0 0
      %1608 = vmatpush1.bf16.msra.mxu0 %v1523
      %1609 = vmatprep.subr.bf16.mxu0 0
      %1610 = vmatpush1.bf16.msra.mxu0 %v1526
      %1611 = vmatprep.subr.bf16.mxu0 0
      %1612 = vmatpush1.bf16.msra.mxu0 %v1529
      %1613 = vmatprep.subr.bf16.mxu0 0
      %1614 = vmatpush1.bf16.msra.mxu0 0
      %1615 = vmatprep.subr.bf16.mxu0 0
      %1616 = vmatpush1.bf16.msra.mxu0 0
      %1617 = vmatprep.subr.bf16.mxu0 0
      %1618 = vmatpush1.bf16.msra.mxu0 0
      %1619 = vmatprep.subr.bf16.mxu0 0
      %1620 = vmatpush1.bf16.msra.mxu0 0
      %1621 = vmatprep.subr.bf16.mxu0 0
      %1622 = vmatpush1.bf16.msra.mxu0 0
      %1623 = vmatprep.subr.bf16.mxu0 0
      %1624 = vmatpush1.bf16.msra.mxu0 0
      %1625 = vmatprep.subr.bf16.mxu0 0
      %1626 = vmatpush1.bf16.msra.mxu0 0
      %1627 = vmatprep.subr.bf16.mxu0 0
      %1628 = vmatpush1.bf16.msra.mxu0 0
      %1629 = vmatprep.mubr.bf16.mxu0 0
      %1630 = vmatmul.mubr.bf16.gmra.mrb[0].mxu0 %v1393
      %v1631 = vpop.f32.mrb[0].mxu0
      %v1632 = vadd.f32 0.0, %v1631
      %v1633 = vpop.f32.mrb[0].mxu0
      %v1634 = vpop.f32.mrb[0].mxu0
      %v1635 = vadd.f32 0.0, %v1634
      %v1636 = vpop.f32.mrb[0].mxu0
      %1637 = vdwg.mxu0
      %v1638 = vrot.slane %v1589, 7
      %v1639 = vrot.slane %v1593, 7
      %v1640 = vsel %vm775, %v1638, %v1639
      %v1641 = vsel %vm775, %v1639, %v1638
      %v1642 = vsel %vm782, %v1641, 0.0
      %v1643 = vsel %vm783, %v1640, 0.0
      %v1644 = vrot.slane %v1632, 1
      %v1645 = vrot.slane %v1635, 1
      %v1646 = vsel %vm792, %v1644, %v1645
      %v1647 = vsel %vm792, %v1645, %v1644
      %v1648 = vsel %vm799, %v1646, 0.0
      %v1649 = vsel %vm800, %v1647, 0.0
      %v1650 = vadd.f32 %v1591, %v1642
      %v1651 = vadd.f32 %v1595, %v1643
      %v1652 = vadd.f32 %v1650, %v1648
      %v1653 = vadd.f32 %v1651, %v1649
      %v1654 = vld [vmem:[%s7 + $0x2] sm:$0x1]
      %v1655 = vlaneseq
      %v1656 = vshrl.u32 %v1655, 7
      %v1657 = vsub.s32 0, %v1656
      %v1658 = vrot.slane %v1654, %v1657
      %v1659 = vadd.f32 %v1652, %v1658
      %v1660 = vadd.f32 %v1653, %v1658
      %v1661 = vld [vmem:[%s7 + $0x3] sm:$0x1]
      %v1662 = vld [vmem:[%s7 + $0x4] sm:$0x1]
      %v1663 = vadd.f32 %v1659, %v1660
      %v1664 = vrot.slane %v1663, 4
      %v1665 = vadd.f32 %v1663, %v1664
      %v1666 = vrot.slane %v1665, 2
      %v1667 = vadd.f32 %v1665, %v1666
      %v1668 = vrot.slane %v1667, 1
      %v1669 = vadd.f32 %v1667, %v1668
      %v1670 = vld [vmem:[%s5] sm:$0xff]
      %v1671 = vld [vmem:[%s5 + $0x8] sm:$0xff]
      %v1672 = vld [vmem:[%s5 + $0x10] sm:$0xff]
      %v1673 = vld [vmem:[%s5 + $0x18] sm:$0xff]
      %v1674 = vld [vmem:[%s5 + $0x20] sm:$0xff]
      %v1675 = vld [vmem:[%s5 + $0x28] sm:$0xff]
      %v1676 = vld [vmem:[%s5 + $0x30] sm:$0xff]
      %v1677 = vld [vmem:[%s5 + $0x38] sm:$0xff]
      %v1678 = vld [vmem:[%s5 + $0x40] sm:$0xff]
      %v1679 = vld [vmem:[%s5 + $0x48] sm:$0xff]
      %v1680 = vld [vmem:[%s5 + $0x50] sm:$0xff]
      %v1681 = vld [vmem:[%s5 + $0x58] sm:$0xff]
      %v1682 = vld [vmem:[%s5 + $0x60] sm:$0xff]
      %v1683 = vld [vmem:[%s5 + $0x68] sm:$0xff]
      %v1684 = vld [vmem:[%s5 + $0x70] sm:$0xff]
      %v1685 = vld [vmem:[%s5 + $0x78] sm:$0xff]
      %1686 = vmatprep.subr.mxu0 0.0
      %1687 = vmatpush1.msra.mxu0 %v1670
      %1688 = vmatprep.subr.mxu0 0.0
      %1689 = vmatpush1.msra.mxu0 %v1671
      %1690 = vmatprep.subr.mxu0 0.0
      %1691 = vmatpush1.msra.mxu0 %v1672
      %1692 = vmatprep.subr.mxu0 0.0
      %1693 = vmatpush1.msra.mxu0 %v1673
      %1694 = vmatprep.subr.mxu0 0.0
      %1695 = vmatpush1.msra.mxu0 %v1674
      %1696 = vmatprep.subr.mxu0 0.0
      %1697 = vmatpush1.msra.mxu0 %v1675
      %1698 = vmatprep.subr.mxu0 0.0
      %1699 = vmatpush1.msra.mxu0 %v1676
      %1700 = vmatprep.subr.mxu0 0.0
      %1701 = vmatpush1.msra.mxu0 %v1677
      %1702 = vmatprep.subr.mxu0 0.0
      %1703 = vmatpush1.msra.mxu0 %v1678
      %1704 = vmatprep.subr.mxu0 0.0
      %1705 = vmatpush1.msra.mxu0 %v1679
      %1706 = vmatprep.subr.mxu0 0.0
      %1707 = vmatpush1.msra.mxu0 %v1680
      %1708 = vmatprep.subr.mxu0 0.0
      %1709 = vmatpush1.msra.mxu0 %v1681
      %1710 = vmatprep.subr.mxu0 0.0
      %1711 = vmatpush1.msra.mxu0 %v1682
      %1712 = vmatprep.subr.mxu0 0.0
      %1713 = vmatpush1.msra.mxu0 %v1683
      %1714 = vmatprep.subr.mxu0 0.0
      %1715 = vmatpush1.msra.mxu0 %v1684
      %1716 = vmatprep.subr.mxu0 0.0
      %1717 = vmatpush1.msra.mxu0 %v1685
      %1718 = vmatprep.subr.mxu0 0.0
      %1719 = vmatpush1.msra.mxu0 0.0
      %1720 = vmatprep.subr.mxu0 0.0
      %1721 = vmatpush1.msra.mxu0 0.0
      %1722 = vmatprep.subr.mxu0 0.0
      %1723 = vmatpush1.msra.mxu0 0.0
      %1724 = vmatprep.subr.mxu0 0.0
      %1725 = vmatpush1.msra.mxu0 0.0
      %1726 = vmatprep.subr.mxu0 0.0
      %1727 = vmatpush1.msra.mxu0 0.0
      %1728 = vmatprep.subr.mxu0 0.0
      %1729 = vmatpush1.msra.mxu0 0.0
      %1730 = vmatprep.subr.mxu0 0.0
      %1731 = vmatpush1.msra.mxu0 0.0
      %1732 = vmatprep.subr.mxu0 0.0
      %1733 = vmatpush1.msra.mxu0 0.0
      %1734 = vmatprep.subr.mxu0 0.0
      %1735 = vmatpush1.msra.mxu0 0.0
      %1736 = vmatprep.subr.mxu0 0.0
      %1737 = vmatpush1.msra.mxu0 0.0
      %1738 = vmatprep.subr.mxu0 0.0
      %1739 = vmatpush1.msra.mxu0 0.0
      %1740 = vmatprep.subr.mxu0 0.0
      %1741 = vmatpush1.msra.mxu0 0.0
      %1742 = vmatprep.subr.mxu0 0.0
      %1743 = vmatpush1.msra.mxu0 0.0
      %1744 = vmatprep.subr.mxu0 0.0
      %1745 = vmatpush1.msra.mxu0 0.0
      %1746 = vmatprep.subr.mxu0 0.0
      %1747 = vmatpush1.msra.mxu0 0.0
      %1748 = vmatprep.subr.mxu0 0.0
      %1749 = vmatpush1.msra.mxu0 0.0
      %1750 = vmatprep.mubr.f32.mxu0 0.0
      %1751 = vmatmul.mubr.f32.gmra.mrb[0].mxu0 %v1669
      %v1752 = vpop.f32.mrb[0].mxu0
      %v1753 = vadd.f32 0.0, %v1752
      %v1754 = vpop.f32.mrb[0].mxu0
      %1755 = vdwg.mxu0
      %v1756 = vlaneseq
      %v1757 = vshrl.u32 %v1756, 7
      %v1758 = vsub.s32 0, %v1757
      %v1759 = vrot.slane %v1753, %v1758
      %v1760 = vsub.f32 %v1659, %v1759
      %v1761 = vsub.f32 %v1660, %v1759
      %v1762 = vmul.f32 %v1760, %v1760
      %v1763 = vmul.f32 %v1761, %v1761
      %v1764 = vadd.f32 %v1762, %v1763
      %v1765 = vrot.slane %v1764, 4
      %v1766 = vadd.f32 %v1764, %v1765
      %v1767 = vrot.slane %v1766, 2
      %v1768 = vadd.f32 %v1766, %v1767
      %v1769 = vrot.slane %v1768, 1
      %v1770 = vadd.f32 %v1768, %v1769
      %1771 = vmatprep.subr.mxu0 0.0
      %1772 = vmatpush1.msra.mxu0 %v1670
      %1773 = vmatprep.subr.mxu0 0.0
      %1774 = vmatpush1.msra.mxu0 %v1671
      %1775 = vmatprep.subr.mxu0 0.0
      %1776 = vmatpush1.msra.mxu0 %v1672
      %1777 = vmatprep.subr.mxu0 0.0
      %1778 = vmatpush1.msra.mxu0 %v1673
      %1779 = vmatprep.subr.mxu0 0.0
      %1780 = vmatpush1.msra.mxu0 %v1674
      %1781 = vmatprep.subr.mxu0 0.0
      %1782 = vmatpush1.msra.mxu0 %v1675
      %1783 = vmatprep.subr.mxu0 0.0
      %1784 = vmatpush1.msra.mxu0 %v1676
      %1785 = vmatprep.subr.mxu0 0.0
      %1786 = vmatpush1.msra.mxu0 %v1677
      %1787 = vmatprep.subr.mxu0 0.0
      %1788 = vmatpush1.msra.mxu0 %v1678
      %1789 = vmatprep.subr.mxu0 0.0
      %1790 = vmatpush1.msra.mxu0 %v1679
      %1791 = vmatprep.subr.mxu0 0.0
      %1792 = vmatpush1.msra.mxu0 %v1680
      %1793 = vmatprep.subr.mxu0 0.0
      %1794 = vmatpush1.msra.mxu0 %v1681
      %1795 = vmatprep.subr.mxu0 0.0
      %1796 = vmatpush1.msra.mxu0 %v1682
      %1797 = vmatprep.subr.mxu0 0.0
      %1798 = vmatpush1.msra.mxu0 %v1683
      %1799 = vmatprep.subr.mxu0 0.0
      %1800 = vmatpush1.msra.mxu0 %v1684
      %1801 = vmatprep.subr.mxu0 0.0
      %1802 = vmatpush1.msra.mxu0 %v1685
      %1803 = vmatprep.subr.mxu0 0.0
      %1804 = vmatpush1.msra.mxu0 0.0
      %1805 = vmatprep.subr.mxu0 0.0
      %1806 = vmatpush1.msra.mxu0 0.0
      %1807 = vmatprep.subr.mxu0 0.0
      %1808 = vmatpush1.msra.mxu0 0.0
      %1809 = vmatprep.subr.mxu0 0.0
      %1810 = vmatpush1.msra.mxu0 0.0
      %1811 = vmatprep.subr.mxu0 0.0
      %1812 = vmatpush1.msra.mxu0 0.0
      %1813 = vmatprep.subr.mxu0 0.0
      %1814 = vmatpush1.msra.mxu0 0.0
      %1815 = vmatprep.subr.mxu0 0.0
      %1816 = vmatpush1.msra.mxu0 0.0
      %1817 = vmatprep.subr.mxu0 0.0
      %1818 = vmatpush1.msra.mxu0 0.0
      %1819 = vmatprep.subr.mxu0 0.0
      %1820 = vmatpush1.msra.mxu0 0.0
      %1821 = vmatprep.subr.mxu0 0.0
      %1822 = vmatpush1.msra.mxu0 0.0
      %1823 = vmatprep.subr.mxu0 0.0
      %1824 = vmatpush1.msra.mxu0 0.0
      %1825 = vmatprep.subr.mxu0 0.0
      %1826 = vmatpush1.msra.mxu0 0.0
      %1827 = vmatprep.subr.mxu0 0.0
      %1828 = vmatpush1.msra.mxu0 0.0
      %1829 = vmatprep.subr.mxu0 0.0
      %1830 = vmatpush1.msra.mxu0 0.0
      %1831 = vmatprep.subr.mxu0 0.0
      %1832 = vmatpush1.msra.mxu0 0.0
      %1833 = vmatprep.subr.mxu0 0.0
      %1834 = vmatpush1.msra.mxu0 0.0
      %1835 = vmatprep.mubr.f32.mxu0 0.0
      %1836 = vmatmul.mubr.f32.gmra.mrb[0].mxu0 %v1770
      %v1837 = vpop.f32.mrb[0].mxu0
      %v1838 = vadd.f32 1e-05, %v1837
      %v1839 = vpop.f32.mrb[0].mxu0
      %1840 = vdwg.mxu0
      %v1841 = vrsqrt.pop %v1838
      %v1842 = vlaneseq
      %v1843 = vshrl.u32 %v1842, 7
      %v1844 = vsub.s32 0, %v1843
      %v1845 = vrot.slane %v1841, %v1844
      %v1846 = vmul.f32 %v1760, %v1845
      %v1847 = vmul.f32 %v1761, %v1845
      %v1848 = vlaneseq
      %v1849 = vshrl.u32 %v1848, 7
      %v1850 = vsub.s32 0, %v1849
      %v1851 = vrot.slane %v1661, %v1850
      %v1852 = vmul.f32 %v1846, %v1851
      %v1853 = vmul.f32 %v1847, %v1851
      %v1854 = vlaneseq
      %v1855 = vshrl.u32 %v1854, 7
      %v1856 = vsub.s32 0, %v1855
      %v1857 = vrot.slane %v1662, %v1856
      %v1858 = vadd.f32 %v1852, %v1857
      %v1859 = vadd.f32 %v1853, %v1857
      %v1860 = vlaneseq
      %v1861 = vshrl.u32 %v1860, 7
      %v1862 = vsub.s32 0, %v1861
      %v1863 = vrot.slane %v1389, %v1862
      %v1864 = vmul.f32 %v1858, %v1863
      %v1865 = vmul.f32 %v1859, %v1863
      %v1866 = vlaneseq
      %v1867 = vshrl.u32 %v1866, 7
      %v1868 = vsub.s32 0, %v1867
      %v1869 = vrot.slane %v1391, %v1868
      %v1870 = vadd.f32 %v1864, %v1869
      %v1871 = vadd.f32 %v1865, %v1869
      %v1872 = vxor.u32 %v1870, 2147483648
      %v1873 = vxor.u32 %v1871, 2147483648
      %v1874 = vmul.f32 %v1872, 1.442695
      %v1875 = vpow.pop %v1874
      %v1876 = vmul.f32 %v1873, 1.442695
      %v1877 = vpow.pop %v1876
      %v1878 = vadd.f32 %v1875, 1.0
      %v1879 = vadd.f32 %v1877, 1.0
      %v1880 = vrcp.pop %v1878
      %v1881 = vmul.f32 1.0, %v1880
      %v1882 = vrcp.pop %v1879
      %v1883 = vmul.f32 1.0, %v1882
      %v1884 = vmul.f32 %v1870, %v1881
      %v1885 = vmul.f32 %v1871, %v1883
      %v1886 = vpack.c.bf16 %v1885, %v1884
      %s1887 = scalar_lea.vmem %s4, 192
      %v1888 = vld [vmem:[%s1887] sm:$0xff]
      %v1889 = vld [vmem:[%s1887 + $0x8] sm:$0xf]
      %v1890 = vld [vmem:[%s1887 + $0xc] sm:$0xff]
      %v1891 = vld [vmem:[%s1887 + $0x14] sm:$0xf]
      %v1892 = vld [vmem:[%s1887 + $0x18] sm:$0xff]
      %v1893 = vld [vmem:[%s1887 + $0x20] sm:$0xf]
      %v1894 = vld [vmem:[%s1887 + $0x24] sm:$0xff]
      %v1895 = vld [vmem:[%s1887 + $0x2c] sm:$0xf]
      %v1896 = vld [vmem:[%s1887 + $0x30] sm:$0xff]
      %v1897 = vld [vmem:[%s1887 + $0x38] sm:$0xf]
      %v1898 = vld [vmem:[%s1887 + $0x3c] sm:$0xff]
      %v1899 = vld [vmem:[%s1887 + $0x44] sm:$0xf]
      %v1900 = vld [vmem:[%s1887 + $0x48] sm:$0xff]
      %v1901 = vld [vmem:[%s1887 + $0x50] sm:$0xf]
      %v1902 = vld [vmem:[%s1887 + $0x54] sm:$0xff]
      %v1903 = vld [vmem:[%s1887 + $0x5c] sm:$0xf]
      %v1904 = vld [vmem:[%s1887 + $0x60] sm:$0xff]
      %v1905 = vld [vmem:[%s1887 + $0x68] sm:$0xf]
      %v1906 = vld [vmem:[%s1887 + $0x6c] sm:$0xff]
      %v1907 = vld [vmem:[%s1887 + $0x74] sm:$0xf]
      %v1908 = vld [vmem:[%s1887 + $0x78] sm:$0xff]
      %v1909 = vld [vmem:[%s1887 + $0x80] sm:$0xf]
      %v1910 = vld [vmem:[%s1887 + $0x84] sm:$0xff]
      %v1911 = vld [vmem:[%s1887 + $0x8c] sm:$0xf]
      %v1912 = vld [vmem:[%s1887 + $0x90] sm:$0xff]
      %v1913 = vld [vmem:[%s1887 + $0x98] sm:$0xf]
      %v1914 = vld [vmem:[%s1887 + $0x9c] sm:$0xff]
      %v1915 = vld [vmem:[%s1887 + $0xa4] sm:$0xf]
      %v1916 = vld [vmem:[%s1887 + $0xa8] sm:$0xff]
      %v1917 = vld [vmem:[%s1887 + $0xb0] sm:$0xf]
      %v1918 = vld [vmem:[%s1887 + $0xb4] sm:$0xff]
      %v1919 = vld [vmem:[%s1887 + $0xbc] sm:$0xf]
      %v1952 = vunpack.c.l.b16 %v1888
      %v1953 = vunpack.c.h.b16 %v1888
      %v1954 = vunpack.c.l.b16 %v1889
      %v1955 = vunpack.c.l.b16 %v1890
      %v1956 = vunpack.c.h.b16 %v1890
      %v1957 = vunpack.c.l.b16 %v1891
      %v1958 = vunpack.c.l.b16 %v1892
      %v1959 = vunpack.c.h.b16 %v1892
      %v1960 = vunpack.c.l.b16 %v1893
      %v1961 = vunpack.c.l.b16 %v1894
      %v1962 = vunpack.c.h.b16 %v1894
      %v1963 = vunpack.c.l.b16 %v1895
      %v1964 = vunpack.c.l.b16 %v1896
      %v1965 = vunpack.c.h.b16 %v1896
      %v1966 = vunpack.c.l.b16 %v1897
      %v1967 = vunpack.c.l.b16 %v1898
      %v1968 = vunpack.c.h.b16 %v1898
      %v1969 = vunpack.c.l.b16 %v1899
      %v1970 = vunpack.c.l.b16 %v1900
      %v1971 = vunpack.c.h.b16 %v1900
      %v1972 = vunpack.c.l.b16 %v1901
      %v1973 = vunpack.c.l.b16 %v1902
      %v1974 = vunpack.c.h.b16 %v1902
      %v1975 = vunpack.c.l.b16 %v1903
      %v1976 = vunpack.c.l.b16 %v1904
      %v1977 = vunpack.c.h.b16 %v1904
      %v1978 = vunpack.c.l.b16 %v1905
      %v1979 = vunpack.c.l.b16 %v1906
      %v1980 = vunpack.c.h.b16 %v1906
      %v1981 = vunpack.c.l.b16 %v1907
      %v1982 = vunpack.c.l.b16 %v1908
      %v1983 = vunpack.c.h.b16 %v1908
      %v1984 = vunpack.c.l.b16 %v1909
      %v1985 = vunpack.c.l.b16 %v1910
      %v1986 = vunpack.c.h.b16 %v1910
      %v1987 = vunpack.c.l.b16 %v1911
      %v1988 = vunpack.c.l.b16 %v1912
      %v1989 = vunpack.c.h.b16 %v1912
      %v1990 = vunpack.c.l.b16 %v1913
      %v1991 = vunpack.c.l.b16 %v1914
      %v1992 = vunpack.c.h.b16 %v1914
      %v1993 = vunpack.c.l.b16 %v1915
      %v1994 = vunpack.c.l.b16 %v1916
      %v1995 = vunpack.c.h.b16 %v1916
      %v1996 = vunpack.c.l.b16 %v1917
      %v1997 = vunpack.c.l.b16 %v1918
      %v1998 = vunpack.c.h.b16 %v1918
      %v1999 = vunpack.c.l.b16 %v1919
      %v2000 = vpack.c.b16 %v1955, %v1952
      %v2001 = vpack.c.b16 %v1956, %v1953
      %v2002 = vpack.c.b16 %v1957, %v1954
      %v2003 = vpack.c.b16 %v1961, %v1958
      %v2004 = vpack.c.b16 %v1962, %v1959
      %v2005 = vpack.c.b16 %v1963, %v1960
      %v2006 = vpack.c.b16 %v1967, %v1964
      %v2007 = vpack.c.b16 %v1968, %v1965
      %v2008 = vpack.c.b16 %v1969, %v1966
      %v2009 = vpack.c.b16 %v1973, %v1970
      %v2010 = vpack.c.b16 %v1974, %v1971
      %v2011 = vpack.c.b16 %v1975, %v1972
      %v2012 = vpack.c.b16 %v1979, %v1976
      %v2013 = vpack.c.b16 %v1980, %v1977
      %v2014 = vpack.c.b16 %v1981, %v1978
      %v2015 = vpack.c.b16 %v1985, %v1982
      %v2016 = vpack.c.b16 %v1986, %v1983
      %v2017 = vpack.c.b16 %v1987, %v1984
      %v2018 = vpack.c.b16 %v1991, %v1988
      %v2019 = vpack.c.b16 %v1992, %v1989
      %v2020 = vpack.c.b16 %v1993, %v1990
      %v2021 = vpack.c.b16 %v1997, %v1994
      %v2022 = vpack.c.b16 %v1998, %v1995
      %v2023 = vpack.c.b16 %v1999, %v1996
      %2048 = vmatprep.subr.bf16.mxu0 %v2001
      %2049 = vmatpush1.bf16.msra.mxu0 %v2000
      %2050 = vmatprep.subr.bf16.mxu0 %v2004
      %2051 = vmatpush1.bf16.msra.mxu0 %v2003
      %2052 = vmatprep.subr.bf16.mxu0 %v2007
      %2053 = vmatpush1.bf16.msra.mxu0 %v2006
      %2054 = vmatprep.subr.bf16.mxu0 %v2010
      %2055 = vmatpush1.bf16.msra.mxu0 %v2009
      %2056 = vmatprep.subr.bf16.mxu0 %v2013
      %2057 = vmatpush1.bf16.msra.mxu0 %v2012
      %2058 = vmatprep.subr.bf16.mxu0 %v2016
      %2059 = vmatpush1.bf16.msra.mxu0 %v2015
      %2060 = vmatprep.subr.bf16.mxu0 %v2019
      %2061 = vmatpush1.bf16.msra.mxu0 %v2018
      %2062 = vmatprep.subr.bf16.mxu0 %v2022
      %2063 = vmatpush1.bf16.msra.mxu0 %v2021
      %2064 = vmatprep.subr.bf16.mxu0 0
      %2065 = vmatpush1.bf16.msra.mxu0 0
      %2066 = vmatprep.subr.bf16.mxu0 0
      %2067 = vmatpush1.bf16.msra.mxu0 0
      %2068 = vmatprep.subr.bf16.mxu0 0
      %2069 = vmatpush1.bf16.msra.mxu0 0
      %2070 = vmatprep.subr.bf16.mxu0 0
      %2071 = vmatpush1.bf16.msra.mxu0 0
      %2072 = vmatprep.subr.bf16.mxu0 0
      %2073 = vmatpush1.bf16.msra.mxu0 0
      %2074 = vmatprep.subr.bf16.mxu0 0
      %2075 = vmatpush1.bf16.msra.mxu0 0
      %2076 = vmatprep.subr.bf16.mxu0 0
      %2077 = vmatpush1.bf16.msra.mxu0 0
      %2078 = vmatprep.subr.bf16.mxu0 0
      %2079 = vmatpush1.bf16.msra.mxu0 0
      %2080 = vmatprep.mubr.bf16.mxu0 0
      %2081 = vmatmul.mubr.bf16.gmra.mrb[0].mxu0 %v1886
      %v2082 = vpop.f32.mrb[0].mxu0
      %v2083 = vadd.f32 0.0, %v2082
      %v2084 = vpop.f32.mrb[0].mxu0
      %v2085 = vadd.f32 0.0, %v2084
      %v2086 = vpop.f32.mrb[0].mxu0
      %v2087 = vadd.f32 0.0, %v2086
      %v2088 = vpop.f32.mrb[0].mxu0
      %v2089 = vadd.f32 0.0, %v2088
      %2090 = vdwg.mxu0
      %2091 = vmatprep.subr.bf16.mxu0 0
      %2092 = vmatpush1.bf16.msra.mxu0 %v2002
      %2093 = vmatprep.subr.bf16.mxu0 0
      %2094 = vmatpush1.bf16.msra.mxu0 %v2005
      %2095 = vmatprep.subr.bf16.mxu0 0
      %2096 = vmatpush1.bf16.msra.mxu0 %v2008
      %2097 = vmatprep.subr.bf16.mxu0 0
      %2098 = vmatpush1.bf16.msra.mxu0 %v2011
      %2099 = vmatprep.subr.bf16.mxu0 0
      %2100 = vmatpush1.bf16.msra.mxu0 %v2014
      %2101 = vmatprep.subr.bf16.mxu0 0
      %2102 = vmatpush1.bf16.msra.mxu0 %v2017
      %2103 = vmatprep.subr.bf16.mxu0 0
      %2104 = vmatpush1.bf16.msra.mxu0 %v2020
      %2105 = vmatprep.subr.bf16.mxu0 0
      %2106 = vmatpush1.bf16.msra.mxu0 %v2023
      %2107 = vmatprep.subr.bf16.mxu0 0
      %2108 = vmatpush1.bf16.msra.mxu0 0
      %2109 = vmatprep.subr.bf16.mxu0 0
      %2110 = vmatpush1.bf16.msra.mxu0 0
      %2111 = vmatprep.subr.bf16.mxu0 0
      %2112 = vmatpush1.bf16.msra.mxu0 0
      %2113 = vmatprep.subr.bf16.mxu0 0
      %2114 = vmatpush1.bf16.msra.mxu0 0
      %2115 = vmatprep.subr.bf16.mxu0 0
      %2116 = vmatpush1.bf16.msra.mxu0 0
      %2117 = vmatprep.subr.bf16.mxu0 0
      %2118 = vmatpush1.bf16.msra.mxu0 0
      %2119 = vmatprep.subr.bf16.mxu0 0
      %2120 = vmatpush1.bf16.msra.mxu0 0
      %2121 = vmatprep.subr.bf16.mxu0 0
      %2122 = vmatpush1.bf16.msra.mxu0 0
      %2123 = vmatprep.mubr.bf16.mxu0 0
      %2124 = vmatmul.mubr.bf16.gmra.mrb[0].mxu0 %v1886
      %v2125 = vpop.f32.mrb[0].mxu0
      %v2126 = vadd.f32 0.0, %v2125
      %v2127 = vpop.f32.mrb[0].mxu0
      %v2128 = vpop.f32.mrb[0].mxu0
      %v2129 = vadd.f32 0.0, %v2128
      %v2130 = vpop.f32.mrb[0].mxu0
      %2131 = vdwg.mxu0
      %v2132 = vrot.slane %v2083, 7
      %v2133 = vrot.slane %v2087, 7
      %v2134 = vsel %vm775, %v2132, %v2133
      %v2135 = vsel %vm775, %v2133, %v2132
      %v2136 = vsel %vm782, %v2135, 0.0
      %v2137 = vsel %vm783, %v2134, 0.0
      %v2138 = vrot.slane %v2126, 1
      %v2139 = vrot.slane %v2129, 1
      %v2140 = vsel %vm792, %v2138, %v2139
      %v2141 = vsel %vm792, %v2139, %v2138
      %v2142 = vsel %vm799, %v2140, 0.0
      %v2143 = vsel %vm800, %v2141, 0.0
      %v2144 = vadd.f32 %v2085, %v2136
      %v2145 = vadd.f32 %v2089, %v2137
      %v2146 = vadd.f32 %v2144, %v2142
      %v2147 = vadd.f32 %v2145, %v2143
      %v2148 = vld [vmem:[%s7 + $0x5] sm:$0x1]
      %v2149 = vlaneseq
      %v2150 = vshrl.u32 %v2149, 7
      %v2151 = vsub.s32 0, %v2150
      %v2152 = vrot.slane %v2148, %v2151
      %v2153 = vadd.f32 %v2146, %v2152
      %v2154 = vadd.f32 %v2147, %v2152
      %v2155 = vld [vmem:[%s7 + $0x6] sm:$0x1]
      %v2156 = vld [vmem:[%s7 + $0x7] sm:$0x1]
      %v2157 = vadd.f32 %v2153, %v2154
      %v2158 = vrot.slane %v2157, 4
      %v2159 = vadd.f32 %v2157, %v2158
      %v2160 = vrot.slane %v2159, 2
      %v2161 = vadd.f32 %v2159, %v2160
      %v2162 = vrot.slane %v2161, 1
      %v2163 = vadd.f32 %v2161, %v2162
      %2164 = vmatprep.subr.mxu0 0.0
      %2165 = vmatpush1.msra.mxu0 %v1670
      %2166 = vmatprep.subr.mxu0 0.0
      %2167 = vmatpush1.msra.mxu0 %v1671
      %2168 = vmatprep.subr.mxu0 0.0
      %2169 = vmatpush1.msra.mxu0 %v1672
      %2170 = vmatprep.subr.mxu0 0.0
      %2171 = vmatpush1.msra.mxu0 %v1673
      %2172 = vmatprep.subr.mxu0 0.0
      %2173 = vmatpush1.msra.mxu0 %v1674
      %2174 = vmatprep.subr.mxu0 0.0
      %2175 = vmatpush1.msra.mxu0 %v1675
      %2176 = vmatprep.subr.mxu0 0.0
      %2177 = vmatpush1.msra.mxu0 %v1676
      %2178 = vmatprep.subr.mxu0 0.0
      %2179 = vmatpush1.msra.mxu0 %v1677
      %2180 = vmatprep.subr.mxu0 0.0
      %2181 = vmatpush1.msra.mxu0 %v1678
      %2182 = vmatprep.subr.mxu0 0.0
      %2183 = vmatpush1.msra.mxu0 %v1679
      %2184 = vmatprep.subr.mxu0 0.0
      %2185 = vmatpush1.msra.mxu0 %v1680
      %2186 = vmatprep.subr.mxu0 0.0
      %2187 = vmatpush1.msra.mxu0 %v1681
      %2188 = vmatprep.subr.mxu0 0.0
      %2189 = vmatpush1.msra.mxu0 %v1682
      %2190 = vmatprep.subr.mxu0 0.0
      %2191 = vmatpush1.msra.mxu0 %v1683
      %2192 = vmatprep.subr.mxu0 0.0
      %2193 = vmatpush1.msra.mxu0 %v1684
      %2194 = vmatprep.subr.mxu0 0.0
      %2195 = vmatpush1.msra.mxu0 %v1685
      %2196 = vmatprep.subr.mxu0 0.0
      %2197 = vmatpush1.msra.mxu0 0.0
      %2198 = vmatprep.subr.mxu0 0.0
      %2199 = vmatpush1.msra.mxu0 0.0
      %2200 = vmatprep.subr.mxu0 0.0
      %2201 = vmatpush1.msra.mxu0 0.0
      %2202 = vmatprep.subr.mxu0 0.0
      %2203 = vmatpush1.msra.mxu0 0.0
      %2204 = vmatprep.subr.mxu0 0.0
      %2205 = vmatpush1.msra.mxu0 0.0
      %2206 = vmatprep.subr.mxu0 0.0
      %2207 = vmatpush1.msra.mxu0 0.0
      %2208 = vmatprep.subr.mxu0 0.0
      %2209 = vmatpush1.msra.mxu0 0.0
      %2210 = vmatprep.subr.mxu0 0.0
      %2211 = vmatpush1.msra.mxu0 0.0
      %2212 = vmatprep.subr.mxu0 0.0
      %2213 = vmatpush1.msra.mxu0 0.0
      %2214 = vmatprep.subr.mxu0 0.0
      %2215 = vmatpush1.msra.mxu0 0.0
      %2216 = vmatprep.subr.mxu0 0.0
      %2217 = vmatpush1.msra.mxu0 0.0
      %2218 = vmatprep.subr.mxu0 0.0
      %2219 = vmatpush1.msra.mxu0 0.0
      %2220 = vmatprep.subr.mxu0 0.0
      %2221 = vmatpush1.msra.mxu0 0.0
      %2222 = vmatprep.subr.mxu0 0.0
      %2223 = vmatpush1.msra.mxu0 0.0
      %2224 = vmatprep.subr.mxu0 0.0
      %2225 = vmatpush1.msra.mxu0 0.0
      %2226 = vmatprep.subr.mxu0 0.0
      %2227 = vmatpush1.msra.mxu0 0.0
      %2228 = vmatprep.mubr.f32.mxu0 0.0
      %2229 = vmatmul.mubr.f32.gmra.mrb[0].mxu0 %v2163
      %v2230 = vpop.f32.mrb[0].mxu0
      %v2231 = vadd.f32 0.0, %v2230
      %v2232 = vpop.f32.mrb[0].mxu0
      %2233 = vdwg.mxu0
      %v2234 = vlaneseq
      %v2235 = vshrl.u32 %v2234, 7
      %v2236 = vsub.s32 0, %v2235
      %v2237 = vrot.slane %v2231, %v2236
      %v2238 = vsub.f32 %v2153, %v2237
      %v2239 = vsub.f32 %v2154, %v2237
      %v2240 = vmul.f32 %v2238, %v2238
      %v2241 = vmul.f32 %v2239, %v2239
      %v2242 = vadd.f32 %v2240, %v2241
      %v2243 = vrot.slane %v2242, 4
      %v2244 = vadd.f32 %v2242, %v2243
      %v2245 = vrot.slane %v2244, 2
      %v2246 = vadd.f32 %v2244, %v2245
      %v2247 = vrot.slane %v2246, 1
      %v2248 = vadd.f32 %v2246, %v2247
      %2249 = vmatprep.subr.mxu0 0.0
      %2250 = vmatpush1.msra.mxu0 %v1670
      %2251 = vmatprep.subr.mxu0 0.0
      %2252 = vmatpush1.msra.mxu0 %v1671
      %2253 = vmatprep.subr.mxu0 0.0
      %2254 = vmatpush1.msra.mxu0 %v1672
      %2255 = vmatprep.subr.mxu0 0.0
      %2256 = vmatpush1.msra.mxu0 %v1673
      %2257 = vmatprep.subr.mxu0 0.0
      %2258 = vmatpush1.msra.mxu0 %v1674
      %2259 = vmatprep.subr.mxu0 0.0
      %2260 = vmatpush1.msra.mxu0 %v1675
      %2261 = vmatprep.subr.mxu0 0.0
      %2262 = vmatpush1.msra.mxu0 %v1676
      %2263 = vmatprep.subr.mxu0 0.0
      %2264 = vmatpush1.msra.mxu0 %v1677
      %2265 = vmatprep.subr.mxu0 0.0
      %2266 = vmatpush1.msra.mxu0 %v1678
      %2267 = vmatprep.subr.mxu0 0.0
      %2268 = vmatpush1.msra.mxu0 %v1679
      %2269 = vmatprep.subr.mxu0 0.0
      %2270 = vmatpush1.msra.mxu0 %v1680
      %2271 = vmatprep.subr.mxu0 0.0
      %2272 = vmatpush1.msra.mxu0 %v1681
      %2273 = vmatprep.subr.mxu0 0.0
      %2274 = vmatpush1.msra.mxu0 %v1682
      %2275 = vmatprep.subr.mxu0 0.0
      %2276 = vmatpush1.msra.mxu0 %v1683
      %2277 = vmatprep.subr.mxu0 0.0
      %2278 = vmatpush1.msra.mxu0 %v1684
      %2279 = vmatprep.subr.mxu0 0.0
      %2280 = vmatpush1.msra.mxu0 %v1685
      %2281 = vmatprep.subr.mxu0 0.0
      %2282 = vmatpush1.msra.mxu0 0.0
      %2283 = vmatprep.subr.mxu0 0.0
      %2284 = vmatpush1.msra.mxu0 0.0
      %2285 = vmatprep.subr.mxu0 0.0
      %2286 = vmatpush1.msra.mxu0 0.0
      %2287 = vmatprep.subr.mxu0 0.0
      %2288 = vmatpush1.msra.mxu0 0.0
      %2289 = vmatprep.subr.mxu0 0.0
      %2290 = vmatpush1.msra.mxu0 0.0
      %2291 = vmatprep.subr.mxu0 0.0
      %2292 = vmatpush1.msra.mxu0 0.0
      %2293 = vmatprep.subr.mxu0 0.0
      %2294 = vmatpush1.msra.mxu0 0.0
      %2295 = vmatprep.subr.mxu0 0.0
      %2296 = vmatpush1.msra.mxu0 0.0
      %2297 = vmatprep.subr.mxu0 0.0
      %2298 = vmatpush1.msra.mxu0 0.0
      %2299 = vmatprep.subr.mxu0 0.0
      %2300 = vmatpush1.msra.mxu0 0.0
      %2301 = vmatprep.subr.mxu0 0.0
      %2302 = vmatpush1.msra.mxu0 0.0
      %2303 = vmatprep.subr.mxu0 0.0
      %2304 = vmatpush1.msra.mxu0 0.0
      %2305 = vmatprep.subr.mxu0 0.0
      %2306 = vmatpush1.msra.mxu0 0.0
      %2307 = vmatprep.subr.mxu0 0.0
      %2308 = vmatpush1.msra.mxu0 0.0
      %2309 = vmatprep.subr.mxu0 0.0
      %2310 = vmatpush1.msra.mxu0 0.0
      %2311 = vmatprep.subr.mxu0 0.0
      %2312 = vmatpush1.msra.mxu0 0.0
      %2313 = vmatprep.mubr.f32.mxu0 0.0
      %2314 = vmatmul.mubr.f32.gmra.mrb[0].mxu0 %v2248
      %v2315 = vpop.f32.mrb[0].mxu0
      %v2316 = vadd.f32 1e-05, %v2315
      %v2317 = vpop.f32.mrb[0].mxu0
      %2318 = vdwg.mxu0
      %v2319 = vrsqrt.pop %v2316
      %v2320 = vlaneseq
      %v2321 = vshrl.u32 %v2320, 7
      %v2322 = vsub.s32 0, %v2321
      %v2323 = vrot.slane %v2319, %v2322
      %v2324 = vmul.f32 %v2238, %v2323
      %v2325 = vmul.f32 %v2239, %v2323
      %v2326 = vlaneseq
      %v2327 = vshrl.u32 %v2326, 7
      %v2328 = vsub.s32 0, %v2327
      %v2329 = vrot.slane %v2155, %v2328
      %v2330 = vmul.f32 %v2324, %v2329
      %v2331 = vmul.f32 %v2325, %v2329
      %v2332 = vlaneseq
      %v2333 = vshrl.u32 %v2332, 7
      %v2334 = vsub.s32 0, %v2333
      %v2335 = vrot.slane %v2156, %v2334
      %v2336 = vadd.f32 %v2330, %v2335
      %v2337 = vadd.f32 %v2331, %v2335
      %v2338 = vxor.u32 %v2336, 2147483648
      %v2339 = vxor.u32 %v2337, 2147483648
      %v2340 = vmul.f32 %v2338, 1.442695
      %v2341 = vpow.pop %v2340
      %v2342 = vmul.f32 %v2339, 1.442695
      %v2343 = vpow.pop %v2342
      %v2344 = vadd.f32 %v2341, 1.0
      %v2345 = vadd.f32 %v2343, 1.0
      %v2346 = vrcp.pop %v2344
      %v2347 = vmul.f32 1.0, %v2346
      %v2348 = vrcp.pop %v2345
      %v2349 = vmul.f32 1.0, %v2348
      %v2350 = vmul.f32 %v2336, %v2347
      %v2351 = vmul.f32 %v2337, %v2349
      %v2352 = vld [vmem:[%s361] sm:$0xff]
      %v2353 = vld [vmem:[%s361 + $0x8] sm:$0xff]
      %v2354 = vadd.f32 %v2350, %v2352
      %v2355 = vadd.f32 %v2351, %v2353
      %2356 = vst [vmem:[%s361] sm:$0xff] %v2354
      %2357 = vst [vmem:[%s361 + $0x8] sm:$0xff] %v2355
      %s2358 = smul.u32 2, %s21
      %p2359 = scmp.lt.s32.totalorder %s2358, 3
      %s2360 = scalar_select %p2359, %s2358, 3
      %s2361 = smul.addr %s2360, 8
      %s2362 = scalar_lea.vmem %s10, %s2361
      // Predicated region
      $region61: #{inverted_residual_forward.1} parent=59 // pred_check
        %p2363 = pneg %p254
      $region62: #{inverted_residual_forward.1} parent=59 // pred_check_branch
        %2365 = sbr.rel (%p2363) target = $region64
      $region63: #{inverted_residual_forward.1} parent=59 // pred_region
        %s2366 = smul.u32 2, %s21
      $region64: #{inverted_residual_forward.1} parent=59 // pred_fallthru
        _
    $region60: #{inverted_residual_forward.1} parent=5 // pred_fallthru
      _
    %p2367 = scmp.le.s32.totalorder 2, %s16
    // Predicated region
    $region65: #{inverted_residual_forward.1} parent=5 // pred_check
      %p2368 = pneg %p2367
    $region66: #{inverted_residual_forward.1} parent=5 // pred_check_branch
      %2370 = sbr.rel (%p2368) target = $region68
    $region67: #{inverted_residual_forward.1} parent=5 // pred_region
      %s2371 = ssub.s32 %s16, 2
      // Predicated region
      $region69: #{inverted_residual_forward.1} parent=67 // pred_check
        %p2372 = pneg %p260
      $region70: #{inverted_residual_forward.1} parent=67 // pred_check_branch
        %2374 = sbr.rel (%p2372) target = $region72
      $region71: #{inverted_residual_forward.1} parent=67 // pred_region
        %s2375 = smul.u32 2, %s22
        %p2376 = scmp.lt.s32.totalorder %s2375, 3
        %s2377 = scalar_select %p2376, %s2375, 3
        %s2378 = smul.addr %s2377, 8
        %s2379 = scalar_lea.vmem %s10, %s2378
      $region72: #{inverted_residual_forward.1} parent=67 // pred_fallthru
        _
    $region68: #{inverted_residual_forward.1} parent=5 // pred_fallthru
      _
  $region6: #{inverted_residual_forward.1} parent=0 // loop_footer
    %s20 = sadd.s32 1, %s16
  $region7: #{inverted_residual_forward.1} parent=0 // loop_footer_branch
    %15 = sbr.rel target = $region3
  $region8: #{inverted_residual_forward.1} parent=0 // loop_exit
    _

</llo_original>
